<compile_context>
chip_gen: v6e
topology: v6e:2x2x1
jax: 0.10.0
libtpu: 0.0.40
codegen_flags: <defaults>
</compile_context>

<pallas_src>
import numpy as np
import jax
import jax.numpy as jnp
from jax.experimental import pallas as pl
from jax.experimental.pallas import tpu as pltpu

DESC_DIM = 32    # descriptor channels
CTX_DIM = 16     # decoder context channels
HIDDEN = 32      # decoder hidden width
IN_CH = 3        # RGB input
IN_CH_PAD = 8    # pad input channels to one full f32 sublane tile


# ----------------------------------------------------------------------------
# Host-side constant operators (per-sample pooling / bilinear resize matrices)
# ----------------------------------------------------------------------------
def _interp_matrix_np(lout, lin):
    """Row-stochastic 1-D bilinear matrix matching F.interpolate(align_corners=False)."""
    scale = lin / lout
    src = (np.arange(lout) + 0.5) * scale - 0.5
    src = np.clip(src, 0.0, None)
    x0 = np.clip(np.floor(src).astype(np.int64), 0, lin - 1)
    x1 = np.minimum(x0 + 1, lin - 1)
    w1 = (src - x0).astype(np.float32)
    w0 = (1.0 - w1).astype(np.float32)
    m = np.zeros((lout, lin), np.float32)
    np.add.at(m, (np.arange(lout), x0), w0)
    np.add.at(m, (np.arange(lout), x1), w1)
    return m


def _pool_op_np(h, w):
    """Per-sample [h*w, (h/2)*(w/2)] right-multiply operator = 2x2 average pool."""
    ph = np.zeros((h, h // 2), np.float32)
    ph[np.arange(h), np.arange(h) // 2] = 0.5
    pw = np.zeros((w, w // 2), np.float32)
    pw[np.arange(w), np.arange(w) // 2] = 0.5
    return np.kron(ph, pw)


def _resize_op_np(hin, win, hout, wout):
    """Per-sample [hin*win, hout*wout] right-multiply bilinear resize (align_corners=False)."""
    wh = _interp_matrix_np(hout, hin)   # [hout, hin]
    ww = _interp_matrix_np(wout, win)   # [wout, win]
    return np.kron(wh.T, ww.T)


# ----------------------------------------------------------------------------
# Fused Pallas kernel: full forward for ONE batch sample (grid = batch)
# ----------------------------------------------------------------------------
def _mm(a, b):
    """MXU matmul: bf16 inputs, f32 accumulation."""
    return jnp.dot(a.astype(jnp.bfloat16), b.astype(jnp.bfloat16),
                   preferred_element_type=jnp.float32)


def _dedode_kernel(
    x_ref,                                                   # (1, 8, HW)  f32
    ew0_ref, eb0_ref, ew1_ref, eb1_ref, ew2_ref, eb2_ref,    # encoder W^T / bias cols
    pool0_ref, pool1_ref,                                    # per-sample pool operators
    d0w1_ref, d0b1_ref, d0w2_ref, d0b2_ref,                  # decoder scale 0 (coarsest)
    up0_ref,                                                 # quarter -> half upsample
    d1w1_ref, d1b1_ref, d1w2_ref, d1b2_ref,                  # decoder scale 1
    up1_ref,                                                 # half -> full upsample
    d2w1_ref, d2b1_ref, d2w2_ref, d2b2_ref,                  # decoder scale 2 (finest)
    o_ref,                                                   # (1, 32, HW) f32
):
    relu = lambda v: jnp.maximum(v, 0.0)
    x = x_ref[0]                                             # [8, HW] (channels padded)

    # ----- encoder pyramid (1x1 conv + ReLU, 2x2 avg-pool between levels) -----
    f0 = relu(_mm(ew0_ref[...], x) + eb0_ref[...])           # [ 8, HW   ]
    p0 = _mm(f0, pool0_ref[...])                             # [ 8, HW/4 ]
    f1 = relu(_mm(ew1_ref[...], p0) + eb1_ref[...])          # [16, HW/4 ]
    p1 = _mm(f1, pool1_ref[...])                             # [16, HW/16]
    f2 = relu(_mm(ew2_ref[...], p1) + eb2_ref[...])          # [32, HW/16]

    # ----- decoder scale 0 (coarsest) -----
    h0 = relu(_mm(d0w1_ref[...], f2) + d0b1_ref[...])
    o0 = _mm(d0w2_ref[...], h0) + d0b2_ref[...]              # [48, HW/16]
    dc = _mm(o0, up0_ref[...])                               # [48, HW/4] desc+ctx upsampled together
    desc, ctx = dc[:DESC_DIM], dc[DESC_DIM:]

    # ----- decoder scale 1: concat(feature, context) -> one K=32 matmul -----
    h1 = relu(_mm(d1w1_ref[...], jnp.concatenate([f1, ctx], axis=0)) + d1b1_ref[...])
    o1 = _mm(d1w2_ref[...], h1) + d1b2_ref[...]              # [48, HW/4]
    dc = jnp.concatenate([desc + o1[:DESC_DIM], o1[DESC_DIM:]], axis=0)
    dc = _mm(dc, up1_ref[...])                               # [48, HW]
    desc, ctx = dc[:DESC_DIM], dc[DESC_DIM:]

    # ----- decoder scale 2 (finest): concat -> one K=24 matmul -----
    h2 = relu(_mm(d2w1_ref[...], jnp.concatenate([f0, ctx], axis=0)) + d2b1_ref[...])
    o2 = _mm(d2w2_ref[...], h2) + d2b2_ref[...]              # [48, HW]
    desc = desc + o2[:DESC_DIM]

    o_ref[0] = desc.astype(o_ref.dtype)                      # lane-dense (32, HW) store


# ----------------------------------------------------------------------------
# Parameters (deterministic, in-script) -- synthetic encoder / decoder
# ----------------------------------------------------------------------------
def init_params(key):
    def w(k, shape, scale=0.2):
        return scale * jax.random.normal(jax.random.fold_in(key, k), shape, jnp.float32)

    params = {
        # encoder: 1x1 convs 3->8->16->32
        "enc_w0": w(0, (IN_CH, 8)),  "enc_b0": w(1, (1, 8), 0.05),
        "enc_w1": w(2, (8, 16)),     "enc_b1": w(3, (1, 16), 0.05),
        "enc_w2": w(4, (16, 32)),    "enc_b2": w(5, (1, 32), 0.05),
    }
    # decoder per scale (coarsest first): input = feature (+ context after idx 0)
    feat_channels = [32, 16, 8]  # reversed feature channel counts
    for idx, fc in enumerate(feat_channels):
        cin = fc + (0 if idx == 0 else CTX_DIM)
        params[f"dec{idx}_w1"] = w(10 + 4 * idx, (cin, HIDDEN))
        params[f"dec{idx}_b1"] = w(11 + 4 * idx, (1, HIDDEN), 0.05)
        params[f"dec{idx}_w2"] = w(12 + 4 * idx, (HIDDEN, DESC_DIM + CTX_DIM))
        params[f"dec{idx}_b2"] = w(13 + 4 * idx, (1, DESC_DIM + CTX_DIM), 0.05)
    return params


# ----------------------------------------------------------------------------
# Forward (mirrors DeDoDeDescriptor.forward), one pallas_call, grid over batch
# ----------------------------------------------------------------------------
def dedode_descriptor_forward(x_nchw, params):
    n, cin, h, w = x_nchw.shape
    hw, hw4, hw16 = h * w, (h // 2) * (w // 2), (h // 4) * (w // 4)
    bf = jnp.bfloat16

    # NCHW -> (N, C_pad, H*W): channel zero-pad + free reshape, no HBM transpose.
    x2 = jnp.pad(x_nchw, ((0, 0), (0, IN_CH_PAD - cin), (0, 0), (0, 0)))
    x2 = x2.reshape(n, IN_CH_PAD, hw)

    p = params
    col = lambda b: b.reshape(-1, 1).astype(jnp.float32)   # (1,C) bias -> (C,1) f32 column
    wt = lambda wgt: wgt.T.astype(bf)                      # (Cin,Cout) -> bf16 (Cout,Cin)

    # Pad the 3 input channels of the first conv weight to 8 (zeros -> no-op).
    ew0 = jnp.pad(p["enc_w0"], ((0, IN_CH_PAD - cin), (0, 0)))  # (8, 8)

    # Per-sample resample operators (right-multiply, W fastest in the flat axis).
    pool0 = jnp.asarray(_pool_op_np(h, w), dtype=bf)                           # [HW,    HW/4 ]
    pool1 = jnp.asarray(_pool_op_np(h // 2, w // 2), dtype=bf)                 # [HW/4,  HW/16]
    up0 = jnp.asarray(_resize_op_np(h // 4, w // 4, h // 2, w // 2), dtype=bf)  # [HW/16, HW/4 ]
    up1 = jnp.asarray(_resize_op_np(h // 2, w // 2, h, w), dtype=bf)            # [HW/4,  HW   ]

    inputs = [
        x2,
        wt(ew0), col(p["enc_b0"]),
        wt(p["enc_w1"]), col(p["enc_b1"]),
        wt(p["enc_w2"]), col(p["enc_b2"]),
        pool0, pool1,
        wt(p["dec0_w1"]), col(p["dec0_b1"]), wt(p["dec0_w2"]), col(p["dec0_b2"]),
        up0,
        wt(p["dec1_w1"]), col(p["dec1_b1"]), wt(p["dec1_w2"]), col(p["dec1_b2"]),
        up1,
        wt(p["dec2_w1"]), col(p["dec2_b1"]), wt(p["dec2_w2"]), col(p["dec2_b2"]),
    ]

    def const_spec(a):  # whole array resident in VMEM, fetched once (constant block idx)
        zeros = (0,) * a.ndim
        return pl.BlockSpec(a.shape, lambda i: zeros)

    in_specs = [pl.BlockSpec((1, IN_CH_PAD, hw), lambda i: (i, 0, 0))]
    in_specs += [const_spec(a) for a in inputs[1:]]
    out_specs = pl.BlockSpec((1, DESC_DIM, hw), lambda i: (i, 0, 0))

    # Advisory cost hint for the XLA scheduler.
    flops = 2 * n * (
        8 * IN_CH_PAD * hw + 16 * 8 * hw4 + 32 * 16 * hw16            # encoder convs
        + 8 * hw * hw4 + 16 * hw4 * hw16                              # pools
        + (32 * 32 + 48 * 32) * hw16 + (32 * 32 + 48 * 32) * hw4      # decoder scales 0, 1
        + (32 * 24 + 48 * 32) * hw                                    # decoder scale 2
        + 48 * hw16 * hw4 + 48 * hw4 * hw                             # upsamples
    )
    cost = pl.CostEstimate(flops=flops, transcendentals=0,
                           bytes_accessed=4 * n * (IN_CH_PAD + DESC_DIM) * hw)

    # TODO(synk): for production DeDoDe resolutions add a spatial tile axis over
    # HW (weights kept resident via constant index_maps) and shrink the tile on
    # v7x's 64 MiB VMEM; the toy size fits a whole sample per grid step.
    desc = pl.pallas_call(
        _dedode_kernel,
        out_shape=jax.ShapeDtypeStruct((n, DESC_DIM, hw), jnp.float32),
        grid=(n,),
        in_specs=in_specs,
        out_specs=out_specs,
        compiler_params=pltpu.CompilerParams(
            dimension_semantics=("parallel",),
            vmem_limit_bytes=32 * 1024 * 1024,
        ),
        cost_estimate=cost,
    )(*inputs)

    return desc.reshape(n, DESC_DIM, h, w)   # free reshape, no transpose


# ----------------------------------------------------------------------------
# Pure-numpy reference (NHWC, direct pooling / separable bilinear) for checking
# ----------------------------------------------------------------------------
def _reference_forward_np(x_nchw, params):
    x = np.transpose(np.asarray(x_nchw), (0, 2, 3, 1)).astype(np.float32)
    p = {k: np.asarray(v) for k, v in params.items()}

    def conv(a, wgt, b):
        return np.maximum(a @ wgt + b, 0.0)

    def pool(a):
        n, hh, ww, c = a.shape
        return a.reshape(n, hh // 2, 2, ww // 2, 2, c).mean(axis=(2, 4))

    def resize(a, size):
        wh = _interp_matrix_np(size[0], a.shape[1])
        ww = _interp_matrix_np(size[1], a.shape[2])
        return np.einsum("ip,jq,npqc->nijc", wh, ww, a)

    f0 = conv(x, p["enc_w0"], p["enc_b0"])
    f1 = conv(pool(f0), p["enc_w1"], p["enc_b1"])
    f2 = conv(pool(f1), p["enc_w2"], p["enc_b2"])
    feats = [f0, f1, f2]
    sizes = [(f.shape[1], f.shape[2]) for f in feats]

    desc, ctx = 0.0, None
    for idx, fm in enumerate(reversed(feats)):
        dec_in = fm if ctx is None else np.concatenate([fm, ctx], axis=-1)
        hid = np.maximum(dec_in @ p[f"dec{idx}_w1"] + p[f"dec{idx}_b1"], 0.0)
        out = hid @ p[f"dec{idx}_w2"] + p[f"dec{idx}_b2"]
        desc = desc + out[..., :DESC_DIM]
        ctx = out[..., DESC_DIM:]
        if idx < len(feats) - 1:
            size = sizes[-(idx + 2)]
            desc = resize(desc, size)
            ctx = resize(ctx, size)
    return np.transpose(desc, (0, 3, 1, 2))


# ----------------------------------------------------------------------------
if __name__ == "__main__":
    key = jax.random.PRNGKey(0)
    params = init_params(key)
    x = jax.random.normal(jax.random.fold_in(key, 999), (2, IN_CH, 16, 16), jnp.float32)

    fwd = jax.jit(dedode_descriptor_forward)
    out = jax.block_until_ready(fwd(x, params))

    assert out.shape == (2, DESC_DIM, 16, 16), out.shape
    assert out.dtype == jnp.float32
    assert bool(jnp.all(jnp.isfinite(out)))

    # Loose tolerance: bf16 MXU inputs (f32 accumulation) + reduced-precision passes.
    ref = _reference_forward_np(x, params)
    np.testing.assert_allclose(np.asarray(out), ref, rtol=5e-2, atol=5e-2)

    print("KERNEL_OK")
</pallas_src>

<mosaic_0001>
module attributes {stable_mosaic.version = 11 : i64} {
  func.func @_dedode_kernel(%arg0: i32, %arg1: memref<1x8x256xf32, #tpu.memory_space<vmem>>, %arg2: memref<8x8xbf16, #tpu.memory_space<vmem>>, %arg3: memref<8x1xf32, #tpu.memory_space<vmem>>, %arg4: memref<16x8xbf16, #tpu.memory_space<vmem>>, %arg5: memref<16x1xf32, #tpu.memory_space<vmem>>, %arg6: memref<32x16xbf16, #tpu.memory_space<vmem>>, %arg7: memref<32x1xf32, #tpu.memory_space<vmem>>, %arg8: memref<256x64xbf16, #tpu.memory_space<vmem>>, %arg9: memref<64x16xbf16, #tpu.memory_space<vmem>>, %arg10: memref<32x32xbf16, #tpu.memory_space<vmem>>, %arg11: memref<32x1xf32, #tpu.memory_space<vmem>>, %arg12: memref<48x32xbf16, #tpu.memory_space<vmem>>, %arg13: memref<48x1xf32, #tpu.memory_space<vmem>>, %arg14: memref<16x64xbf16, #tpu.memory_space<vmem>>, %arg15: memref<32x32xbf16, #tpu.memory_space<vmem>>, %arg16: memref<32x1xf32, #tpu.memory_space<vmem>>, %arg17: memref<48x32xbf16, #tpu.memory_space<vmem>>, %arg18: memref<48x1xf32, #tpu.memory_space<vmem>>, %arg19: memref<64x256xbf16, #tpu.memory_space<vmem>>, %arg20: memref<32x24xbf16, #tpu.memory_space<vmem>>, %arg21: memref<32x1xf32, #tpu.memory_space<vmem>>, %arg22: memref<48x32xbf16, #tpu.memory_space<vmem>>, %arg23: memref<48x1xf32, #tpu.memory_space<vmem>>, %arg24: memref<1x32x256xf32, #tpu.memory_space<vmem>>) attributes {dimension_semantics = [#tpu.dimension_semantics<parallel>], iteration_bounds = array<i64: 2>, scalar_prefetch = 0 : i64, scratch_operands = 0 : i64, tpu.core_type = #tpu.core_type<tc>, window_params = [{transform_indices = @transform_0, window_bounds = array<i64: 1, 8, 256>}, {pipeline_mode = #tpu.pipeline_mode<synchronous>, transform_indices = @transform_1, window_bounds = array<i64: 8, 8>}, {pipeline_mode = #tpu.pipeline_mode<synchronous>, transform_indices = @transform_2, window_bounds = array<i64: 8, 1>}, {pipeline_mode = #tpu.pipeline_mode<synchronous>, transform_indices = @transform_3, window_bounds = array<i64: 16, 8>}, {pipeline_mode = #tpu.pipeline_mode<synchronous>, transform_indices = @transform_4, window_bounds = array<i64: 16, 1>}, {pipeline_mode = #tpu.pipeline_mode<synchronous>, transform_indices = @transform_5, window_bounds = array<i64: 32, 16>}, {pipeline_mode = #tpu.pipeline_mode<synchronous>, transform_indices = @transform_6, window_bounds = array<i64: 32, 1>}, {pipeline_mode = #tpu.pipeline_mode<synchronous>, transform_indices = @transform_7, window_bounds = array<i64: 256, 64>}, {pipeline_mode = #tpu.pipeline_mode<synchronous>, transform_indices = @transform_8, window_bounds = array<i64: 64, 16>}, {pipeline_mode = #tpu.pipeline_mode<synchronous>, transform_indices = @transform_9, window_bounds = array<i64: 32, 32>}, {pipeline_mode = #tpu.pipeline_mode<synchronous>, transform_indices = @transform_10, window_bounds = array<i64: 32, 1>}, {pipeline_mode = #tpu.pipeline_mode<synchronous>, transform_indices = @transform_11, window_bounds = array<i64: 48, 32>}, {pipeline_mode = #tpu.pipeline_mode<synchronous>, transform_indices = @transform_12, window_bounds = array<i64: 48, 1>}, {pipeline_mode = #tpu.pipeline_mode<synchronous>, transform_indices = @transform_13, window_bounds = array<i64: 16, 64>}, {pipeline_mode = #tpu.pipeline_mode<synchronous>, transform_indices = @transform_14, window_bounds = array<i64: 32, 32>}, {pipeline_mode = #tpu.pipeline_mode<synchronous>, transform_indices = @transform_15, window_bounds = array<i64: 32, 1>}, {pipeline_mode = #tpu.pipeline_mode<synchronous>, transform_indices = @transform_16, window_bounds = array<i64: 48, 32>}, {pipeline_mode = #tpu.pipeline_mode<synchronous>, transform_indices = @transform_17, window_bounds = array<i64: 48, 1>}, {pipeline_mode = #tpu.pipeline_mode<synchronous>, transform_indices = @transform_18, window_bounds = array<i64: 64, 256>}, {pipeline_mode = #tpu.pipeline_mode<synchronous>, transform_indices = @transform_19, window_bounds = array<i64: 32, 24>}, {pipeline_mode = #tpu.pipeline_mode<synchronous>, transform_indices = @transform_20, window_bounds = array<i64: 32, 1>}, {pipeline_mode = #tpu.pipeline_mode<synchronous>, transform_indices = @transform_21, window_bounds = array<i64: 48, 32>}, {pipeline_mode = #tpu.pipeline_mode<synchronous>, transform_indices = @transform_22, window_bounds = array<i64: 48, 1>}, {transform_indices = @transform_23, window_bounds = array<i64: 1, 32, 256>}]} {
    %c0 = arith.constant 0 : index
    %c0_0 = arith.constant 0 : index
    %c0_1 = arith.constant 0 : index
    %0 = vector.load %arg1[%c0, %c0_0, %c0_1] : memref<1x8x256xf32, #tpu.memory_space<vmem>>, vector<1x8x256xf32>
    %1 = vector.shape_cast %0 : vector<1x8x256xf32> to vector<8x256xf32>
    %c0_2 = arith.constant 0 : index
    %c0_3 = arith.constant 0 : index
    %2 = vector.load %arg2[%c0_2, %c0_3] : memref<8x8xbf16, #tpu.memory_space<vmem>>, vector<8x8xbf16>
    %3 = arith.truncf %1 : vector<8x256xf32> to vector<8x256xbf16>
    %cst = arith.constant dense<0.000000e+00> : vector<8x256xf32>
    %4 = tpu.matmul %2, %3, %cst {dimension_numbers = #tpu.dot_dimension_numbers<[1], [0], [0], [1], [0, 0, 1, 1], [], []>} : vector<8x8xbf16>, vector<8x256xbf16>, vector<8x256xf32> -> vector<8x256xf32>
    %c0_4 = arith.constant 0 : index
    %c0_5 = arith.constant 0 : index
    %5 = vector.load %arg3[%c0_4, %c0_5] : memref<8x1xf32, #tpu.memory_space<vmem>>, vector<8x1xf32>
    %6 = vector.broadcast %5 : vector<8x1xf32> to vector<8x256xf32>
    %7 = arith.addf %4, %6 : vector<8x256xf32>
    %cst_6 = arith.constant 0.000000e+00 : f32
    %8 = vector.broadcast %cst_6 : f32 to vector<8x256xf32>
    %9 = arith.maximumf %7, %8 : vector<8x256xf32>
    %c0_7 = arith.constant 0 : index
    %c0_8 = arith.constant 0 : index
    %10 = vector.load %arg8[%c0_7, %c0_8] : memref<256x64xbf16, #tpu.memory_space<vmem>>, vector<256x64xbf16>
    %11 = arith.truncf %9 : vector<8x256xf32> to vector<8x256xbf16>
    %cst_9 = arith.constant dense<0.000000e+00> : vector<8x64xf32>
    %12 = tpu.matmul %11, %10, %cst_9 {dimension_numbers = #tpu.dot_dimension_numbers<[1], [0], [0], [1], [0, 0, 1, 1], [], []>} : vector<8x256xbf16>, vector<256x64xbf16>, vector<8x64xf32> -> vector<8x64xf32>
    %c0_10 = arith.constant 0 : index
    %c0_11 = arith.constant 0 : index
    %13 = vector.load %arg4[%c0_10, %c0_11] : memref<16x8xbf16, #tpu.memory_space<vmem>>, vector<16x8xbf16>
    %14 = arith.truncf %12 : vector<8x64xf32> to vector<8x64xbf16>
    %cst_12 = arith.constant dense<0.000000e+00> : vector<16x64xf32>
    %15 = tpu.matmul %13, %14, %cst_12 {dimension_numbers = #tpu.dot_dimension_numbers<[1], [0], [0], [1], [0, 0, 1, 1], [], []>} : vector<16x8xbf16>, vector<8x64xbf16>, vector<16x64xf32> -> vector<16x64xf32>
    %c0_13 = arith.constant 0 : index
    %c0_14 = arith.constant 0 : index
    %16 = vector.load %arg5[%c0_13, %c0_14] : memref<16x1xf32, #tpu.memory_space<vmem>>, vector<16x1xf32>
    %17 = vector.broadcast %16 : vector<16x1xf32> to vector<16x64xf32>
    %18 = arith.addf %15, %17 : vector<16x64xf32>
    %cst_15 = arith.constant 0.000000e+00 : f32
    %19 = vector.broadcast %cst_15 : f32 to vector<16x64xf32>
    %20 = arith.maximumf %18, %19 : vector<16x64xf32>
    %c0_16 = arith.constant 0 : index
    %c0_17 = arith.constant 0 : index
    %21 = vector.load %arg9[%c0_16, %c0_17] : memref<64x16xbf16, #tpu.memory_space<vmem>>, vector<64x16xbf16>
    %22 = arith.truncf %20 : vector<16x64xf32> to vector<16x64xbf16>
    %cst_18 = arith.constant dense<0.000000e+00> : vector<16x16xf32>
    %23 = tpu.matmul %22, %21, %cst_18 {dimension_numbers = #tpu.dot_dimension_numbers<[1], [0], [0], [1], [0, 0, 1, 1], [], []>} : vector<16x64xbf16>, vector<64x16xbf16>, vector<16x16xf32> -> vector<16x16xf32>
    %c0_19 = arith.constant 0 : index
    %c0_20 = arith.constant 0 : index
    %24 = vector.load %arg6[%c0_19, %c0_20] : memref<32x16xbf16, #tpu.memory_space<vmem>>, vector<32x16xbf16>
    %25 = arith.truncf %23 : vector<16x16xf32> to vector<16x16xbf16>
    %cst_21 = arith.constant dense<0.000000e+00> : vector<32x16xf32>
    %26 = tpu.matmul %24, %25, %cst_21 {dimension_numbers = #tpu.dot_dimension_numbers<[1], [0], [0], [1], [0, 0, 1, 1], [], []>} : vector<32x16xbf16>, vector<16x16xbf16>, vector<32x16xf32> -> vector<32x16xf32>
    %c0_22 = arith.constant 0 : index
    %c0_23 = arith.constant 0 : index
    %27 = vector.load %arg7[%c0_22, %c0_23] : memref<32x1xf32, #tpu.memory_space<vmem>>, vector<32x1xf32>
    %28 = vector.broadcast %27 : vector<32x1xf32> to vector<32x16xf32>
    %29 = arith.addf %26, %28 : vector<32x16xf32>
    %cst_24 = arith.constant 0.000000e+00 : f32
    %30 = vector.broadcast %cst_24 : f32 to vector<32x16xf32>
    %31 = arith.maximumf %29, %30 : vector<32x16xf32>
    %c0_25 = arith.constant 0 : index
    %c0_26 = arith.constant 0 : index
    %32 = vector.load %arg10[%c0_25, %c0_26] : memref<32x32xbf16, #tpu.memory_space<vmem>>, vector<32x32xbf16>
    %33 = arith.truncf %31 : vector<32x16xf32> to vector<32x16xbf16>
    %cst_27 = arith.constant dense<0.000000e+00> : vector<32x16xf32>
    %34 = tpu.matmul %32, %33, %cst_27 {dimension_numbers = #tpu.dot_dimension_numbers<[1], [0], [0], [1], [0, 0, 1, 1], [], []>} : vector<32x32xbf16>, vector<32x16xbf16>, vector<32x16xf32> -> vector<32x16xf32>
    %c0_28 = arith.constant 0 : index
    %c0_29 = arith.constant 0 : index
    %35 = vector.load %arg11[%c0_28, %c0_29] : memref<32x1xf32, #tpu.memory_space<vmem>>, vector<32x1xf32>
    %36 = vector.broadcast %35 : vector<32x1xf32> to vector<32x16xf32>
    %37 = arith.addf %34, %36 : vector<32x16xf32>
    %cst_30 = arith.constant 0.000000e+00 : f32
    %38 = vector.broadcast %cst_30 : f32 to vector<32x16xf32>
    %39 = arith.maximumf %37, %38 : vector<32x16xf32>
    %c0_31 = arith.constant 0 : index
    %c0_32 = arith.constant 0 : index
    %40 = vector.load %arg12[%c0_31, %c0_32] : memref<48x32xbf16, #tpu.memory_space<vmem>>, vector<48x32xbf16>
    %41 = arith.truncf %39 : vector<32x16xf32> to vector<32x16xbf16>
    %cst_33 = arith.constant dense<0.000000e+00> : vector<48x16xf32>
    %42 = tpu.matmul %40, %41, %cst_33 {dimension_numbers = #tpu.dot_dimension_numbers<[1], [0], [0], [1], [0, 0, 1, 1], [], []>} : vector<48x32xbf16>, vector<32x16xbf16>, vector<48x16xf32> -> vector<48x16xf32>
    %c0_34 = arith.constant 0 : index
    %c0_35 = arith.constant 0 : index
    %43 = vector.load %arg13[%c0_34, %c0_35] : memref<48x1xf32, #tpu.memory_space<vmem>>, vector<48x1xf32>
    %44 = vector.broadcast %43 : vector<48x1xf32> to vector<48x16xf32>
    %45 = arith.addf %42, %44 : vector<48x16xf32>
    %c0_36 = arith.constant 0 : index
    %c0_37 = arith.constant 0 : index
    %46 = vector.load %arg14[%c0_36, %c0_37] : memref<16x64xbf16, #tpu.memory_space<vmem>>, vector<16x64xbf16>
    %47 = arith.truncf %45 : vector<48x16xf32> to vector<48x16xbf16>
    %cst_38 = arith.constant dense<0.000000e+00> : vector<48x64xf32>
    %48 = tpu.matmul %47, %46, %cst_38 {dimension_numbers = #tpu.dot_dimension_numbers<[1], [0], [0], [1], [0, 0, 1, 1], [], []>} : vector<48x16xbf16>, vector<16x64xbf16>, vector<48x64xf32> -> vector<48x64xf32>
    %49 = vector.extract_strided_slice %48 {offsets = [0, 0], sizes = [32, 64], strides = [1, 1]} : vector<48x64xf32> to vector<32x64xf32>
    %50 = vector.extract_strided_slice %48 {offsets = [32, 0], sizes = [16, 64], strides = [1, 1]} : vector<48x64xf32> to vector<16x64xf32>
    %c0_39 = arith.constant 0 : index
    %c0_40 = arith.constant 0 : index
    %51 = vector.load %arg15[%c0_39, %c0_40] : memref<32x32xbf16, #tpu.memory_space<vmem>>, vector<32x32xbf16>
    %52 = tpu.concatenate %20, %50 in 0 : vector<16x64xf32>, vector<16x64xf32> -> vector<32x64xf32>
    %53 = arith.truncf %52 : vector<32x64xf32> to vector<32x64xbf16>
    %cst_41 = arith.constant dense<0.000000e+00> : vector<32x64xf32>
    %54 = tpu.matmul %51, %53, %cst_41 {dimension_numbers = #tpu.dot_dimension_numbers<[1], [0], [0], [1], [0, 0, 1, 1], [], []>} : vector<32x32xbf16>, vector<32x64xbf16>, vector<32x64xf32> -> vector<32x64xf32>
    %c0_42 = arith.constant 0 : index
    %c0_43 = arith.constant 0 : index
    %55 = vector.load %arg16[%c0_42, %c0_43] : memref<32x1xf32, #tpu.memory_space<vmem>>, vector<32x1xf32>
    %56 = vector.broadcast %55 : vector<32x1xf32> to vector<32x64xf32>
    %57 = arith.addf %54, %56 : vector<32x64xf32>
    %cst_44 = arith.constant 0.000000e+00 : f32
    %58 = vector.broadcast %cst_44 : f32 to vector<32x64xf32>
    %59 = arith.maximumf %57, %58 : vector<32x64xf32>
    %c0_45 = arith.constant 0 : index
    %c0_46 = arith.constant 0 : index
    %60 = vector.load %arg17[%c0_45, %c0_46] : memref<48x32xbf16, #tpu.memory_space<vmem>>, vector<48x32xbf16>
    %61 = arith.truncf %59 : vector<32x64xf32> to vector<32x64xbf16>
    %cst_47 = arith.constant dense<0.000000e+00> : vector<48x64xf32>
    %62 = tpu.matmul %60, %61, %cst_47 {dimension_numbers = #tpu.dot_dimension_numbers<[1], [0], [0], [1], [0, 0, 1, 1], [], []>} : vector<48x32xbf16>, vector<32x64xbf16>, vector<48x64xf32> -> vector<48x64xf32>
    %c0_48 = arith.constant 0 : index
    %c0_49 = arith.constant 0 : index
    %63 = vector.load %arg18[%c0_48, %c0_49] : memref<48x1xf32, #tpu.memory_space<vmem>>, vector<48x1xf32>
    %64 = vector.broadcast %63 : vector<48x1xf32> to vector<48x64xf32>
    %65 = arith.addf %62, %64 : vector<48x64xf32>
    %66 = vector.extract_strided_slice %65 {offsets = [0, 0], sizes = [32, 64], strides = [1, 1]} : vector<48x64xf32> to vector<32x64xf32>
    %67 = arith.addf %49, %66 : vector<32x64xf32>
    %68 = vector.extract_strided_slice %65 {offsets = [32, 0], sizes = [16, 64], strides = [1, 1]} : vector<48x64xf32> to vector<16x64xf32>
    %69 = tpu.concatenate %67, %68 in 0 : vector<32x64xf32>, vector<16x64xf32> -> vector<48x64xf32>
    %c0_50 = arith.constant 0 : index
    %c0_51 = arith.constant 0 : index
    %70 = vector.load %arg19[%c0_50, %c0_51] : memref<64x256xbf16, #tpu.memory_space<vmem>>, vector<64x256xbf16>
    %71 = arith.truncf %69 : vector<48x64xf32> to vector<48x64xbf16>
    %cst_52 = arith.constant dense<0.000000e+00> : vector<48x256xf32>
    %72 = tpu.matmul %71, %70, %cst_52 {dimension_numbers = #tpu.dot_dimension_numbers<[1], [0], [0], [1], [0, 0, 1, 1], [], []>} : vector<48x64xbf16>, vector<64x256xbf16>, vector<48x256xf32> -> vector<48x256xf32>
    %73 = vector.extract_strided_slice %72 {offsets = [0, 0], sizes = [32, 256], strides = [1, 1]} : vector<48x256xf32> to vector<32x256xf32>
    %74 = vector.extract_strided_slice %72 {offsets = [32, 0], sizes = [16, 256], strides = [1, 1]} : vector<48x256xf32> to vector<16x256xf32>
    %c0_53 = arith.constant 0 : index
    %c0_54 = arith.constant 0 : index
    %75 = vector.load %arg20[%c0_53, %c0_54] : memref<32x24xbf16, #tpu.memory_space<vmem>>, vector<32x24xbf16>
    %76 = tpu.concatenate %9, %74 in 0 : vector<8x256xf32>, vector<16x256xf32> -> vector<24x256xf32>
    %77 = arith.truncf %76 : vector<24x256xf32> to vector<24x256xbf16>
    %cst_55 = arith.constant dense<0.000000e+00> : vector<32x256xf32>
    %78 = tpu.matmul %75, %77, %cst_55 {dimension_numbers = #tpu.dot_dimension_numbers<[1], [0], [0], [1], [0, 0, 1, 1], [], []>} : vector<32x24xbf16>, vector<24x256xbf16>, vector<32x256xf32> -> vector<32x256xf32>
    %c0_56 = arith.constant 0 : index
    %c0_57 = arith.constant 0 : index
    %79 = vector.load %arg21[%c0_56, %c0_57] : memref<32x1xf32, #tpu.memory_space<vmem>>, vector<32x1xf32>
    %80 = vector.broadcast %79 : vector<32x1xf32> to vector<32x256xf32>
    %81 = arith.addf %78, %80 : vector<32x256xf32>
    %cst_58 = arith.constant 0.000000e+00 : f32
    %82 = vector.broadcast %cst_58 : f32 to vector<32x256xf32>
    %83 = arith.maximumf %81, %82 : vector<32x256xf32>
    %c0_59 = arith.constant 0 : index
    %c0_60 = arith.constant 0 : index
    %84 = vector.load %arg22[%c0_59, %c0_60] : memref<48x32xbf16, #tpu.memory_space<vmem>>, vector<48x32xbf16>
    %85 = arith.truncf %83 : vector<32x256xf32> to vector<32x256xbf16>
    %cst_61 = arith.constant dense<0.000000e+00> : vector<48x256xf32>
    %86 = tpu.matmul %84, %85, %cst_61 {dimension_numbers = #tpu.dot_dimension_numbers<[1], [0], [0], [1], [0, 0, 1, 1], [], []>} : vector<48x32xbf16>, vector<32x256xbf16>, vector<48x256xf32> -> vector<48x256xf32>
    %c0_62 = arith.constant 0 : index
    %c0_63 = arith.constant 0 : index
    %87 = vector.load %arg23[%c0_62, %c0_63] : memref<48x1xf32, #tpu.memory_space<vmem>>, vector<48x1xf32>
    %88 = vector.broadcast %87 : vector<48x1xf32> to vector<48x256xf32>
    %89 = arith.addf %86, %88 : vector<48x256xf32>
    %90 = vector.extract_strided_slice %89 {offsets = [0, 0], sizes = [32, 256], strides = [1, 1]} : vector<48x256xf32> to vector<32x256xf32>
    %91 = arith.addf %73, %90 : vector<32x256xf32>
    %c0_64 = arith.constant 0 : index
    %c0_65 = arith.constant 0 : index
    %c0_66 = arith.constant 0 : index
    %92 = vector.load %arg24[%c0_64, %c0_65, %c0_66] : memref<1x32x256xf32, #tpu.memory_space<vmem>>, vector<1x32x256xf32>
    %93 = vector.shape_cast %92 : vector<1x32x256xf32> to vector<32x256xf32>
    %94 = vector.shape_cast %91 : vector<32x256xf32> to vector<1x32x256xf32>
    tpu.vector_store %arg24[%c0_64, %c0_65, %c0_66], %94 {strides = array<i32>} : memref<1x32x256xf32, #tpu.memory_space<vmem>>, vector<1x32x256xf32>,
    return
  }
  func.func @transform_0(%arg0: i32) -> (i32, i32, i32) {
    %c0_i32 = arith.constant 0 : i32
    %c0_i32_0 = arith.constant 0 : i32
    %c0_i32_1 = arith.constant 0 : i32
    return %arg0, %c0_i32, %c0_i32_0 : i32, i32, i32
  }
  func.func @transform_1(%arg0: i32) -> (i32, i32) {
    %c0_i32 = arith.constant 0 : i32
    %c0_i32_0 = arith.constant 0 : i32
    %c0_i32_1 = arith.constant 0 : i32
    return %c0_i32, %c0_i32_0 : i32, i32
  }
  func.func @transform_2(%arg0: i32) -> (i32, i32) {
    %c0_i32 = arith.constant 0 : i32
    %c0_i32_0 = arith.constant 0 : i32
    %c0_i32_1 = arith.constant 0 : i32
    return %c0_i32, %c0_i32_0 : i32, i32
  }
  func.func @transform_3(%arg0: i32) -> (i32, i32) {
    %c0_i32 = arith.constant 0 : i32
    %c0_i32_0 = arith.constant 0 : i32
    %c0_i32_1 = arith.constant 0 : i32
    return %c0_i32, %c0_i32_0 : i32, i32
  }
  func.func @transform_4(%arg0: i32) -> (i32, i32) {
    %c0_i32 = arith.constant 0 : i32
    %c0_i32_0 = arith.constant 0 : i32
    %c0_i32_1 = arith.constant 0 : i32
    return %c0_i32, %c0_i32_0 : i32, i32
  }
  func.func @transform_5(%arg0: i32) -> (i32, i32) {
    %c0_i32 = arith.constant 0 : i32
    %c0_i32_0 = arith.constant 0 : i32
    %c0_i32_1 = arith.constant 0 : i32
    return %c0_i32, %c0_i32_0 : i32, i32
  }
  func.func @transform_6(%arg0: i32) -> (i32, i32) {
    %c0_i32 = arith.constant 0 : i32
    %c0_i32_0 = arith.constant 0 : i32
    %c0_i32_1 = arith.constant 0 : i32
    return %c0_i32, %c0_i32_0 : i32, i32
  }
  func.func @transform_7(%arg0: i32) -> (i32, i32) {
    %c0_i32 = arith.constant 0 : i32
    %c0_i32_0 = arith.constant 0 : i32
    %c0_i32_1 = arith.constant 0 : i32
    return %c0_i32, %c0_i32_0 : i32, i32
  }
  func.func @transform_8(%arg0: i32) -> (i32, i32) {
    %c0_i32 = arith.constant 0 : i32
    %c0_i32_0 = arith.constant 0 : i32
    %c0_i32_1 = arith.constant 0 : i32
    return %c0_i32, %c0_i32_0 : i32, i32
  }
  func.func @transform_9(%arg0: i32) -> (i32, i32) {
    %c0_i32 = arith.constant 0 : i32
    %c0_i32_0 = arith.constant 0 : i32
    %c0_i32_1 = arith.constant 0 : i32
    return %c0_i32, %c0_i32_0 : i32, i32
  }
  func.func @transform_10(%arg0: i32) -> (i32, i32) {
    %c0_i32 = arith.constant 0 : i32
    %c0_i32_0 = arith.constant 0 : i32
    %c0_i32_1 = arith.constant 0 : i32
    return %c0_i32, %c0_i32_0 : i32, i32
  }
  func.func @transform_11(%arg0: i32) -> (i32, i32) {
    %c0_i32 = arith.constant 0 : i32
    %c0_i32_0 = arith.constant 0 : i32
    %c0_i32_1 = arith.constant 0 : i32
    return %c0_i32, %c0_i32_0 : i32, i32
  }
  func.func @transform_12(%arg0: i32) -> (i32, i32) {
    %c0_i32 = arith.constant 0 : i32
    %c0_i32_0 = arith.constant 0 : i32
    %c0_i32_1 = arith.constant 0 : i32
    return %c0_i32, %c0_i32_0 : i32, i32
  }
  func.func @transform_13(%arg0: i32) -> (i32, i32) {
    %c0_i32 = arith.constant 0 : i32
    %c0_i32_0 = arith.constant 0 : i32
    %c0_i32_1 = arith.constant 0 : i32
    return %c0_i32, %c0_i32_0 : i32, i32
  }
  func.func @transform_14(%arg0: i32) -> (i32, i32) {
    %c0_i32 = arith.constant 0 : i32
    %c0_i32_0 = arith.constant 0 : i32
    %c0_i32_1 = arith.constant 0 : i32
    return %c0_i32, %c0_i32_0 : i32, i32
  }
  func.func @transform_15(%arg0: i32) -> (i32, i32) {
    %c0_i32 = arith.constant 0 : i32
    %c0_i32_0 = arith.constant 0 : i32
    %c0_i32_1 = arith.constant 0 : i32
    return %c0_i32, %c0_i32_0 : i32, i32
  }
  func.func @transform_16(%arg0: i32) -> (i32, i32) {
    %c0_i32 = arith.constant 0 : i32
    %c0_i32_0 = arith.constant 0 : i32
    %c0_i32_1 = arith.constant 0 : i32
    return %c0_i32, %c0_i32_0 : i32, i32
  }
  func.func @transform_17(%arg0: i32) -> (i32, i32) {
    %c0_i32 = arith.constant 0 : i32
    %c0_i32_0 = arith.constant 0 : i32
    %c0_i32_1 = arith.constant 0 : i32
    return %c0_i32, %c0_i32_0 : i32, i32
  }
  func.func @transform_18(%arg0: i32) -> (i32, i32) {
    %c0_i32 = arith.constant 0 : i32
    %c0_i32_0 = arith.constant 0 : i32
    %c0_i32_1 = arith.constant 0 : i32
    return %c0_i32, %c0_i32_0 : i32, i32
  }
  func.func @transform_19(%arg0: i32) -> (i32, i32) {
    %c0_i32 = arith.constant 0 : i32
    %c0_i32_0 = arith.constant 0 : i32
    %c0_i32_1 = arith.constant 0 : i32
    return %c0_i32, %c0_i32_0 : i32, i32
  }
  func.func @transform_20(%arg0: i32) -> (i32, i32) {
    %c0_i32 = arith.constant 0 : i32
    %c0_i32_0 = arith.constant 0 : i32
    %c0_i32_1 = arith.constant 0 : i32
    return %c0_i32, %c0_i32_0 : i32, i32
  }
  func.func @transform_21(%arg0: i32) -> (i32, i32) {
    %c0_i32 = arith.constant 0 : i32
    %c0_i32_0 = arith.constant 0 : i32
    %c0_i32_1 = arith.constant 0 : i32
    return %c0_i32, %c0_i32_0 : i32, i32
  }
  func.func @transform_22(%arg0: i32) -> (i32, i32) {
    %c0_i32 = arith.constant 0 : i32
    %c0_i32_0 = arith.constant 0 : i32
    %c0_i32_1 = arith.constant 0 : i32
    return %c0_i32, %c0_i32_0 : i32, i32
  }
  func.func @transform_23(%arg0: i32) -> (i32, i32, i32) {
    %c0_i32 = arith.constant 0 : i32
    %c0_i32_0 = arith.constant 0 : i32
    %c0_i32_1 = arith.constant 0 : i32
    return %arg0, %c0_i32, %c0_i32_0 : i32, i32, i32
  }
}

</mosaic_0001>

<llo_original>
// kernel: dedode_descriptor_forward.1
$region0: #{dedode_descriptor_forward.1}
  #allocation0 [shape = 'u32[]', space=smem, size = 0x4, offset = 0x4, fixed_abs, tag = 'smem constant byte address 0x4 - core index']
  #allocation1 [shape = 'u32[144,128]{1,0:T(1,128)}', space=vmem, size = 0x12000, scoped, tag = 'internal scratch']
  %s0 = inlined_call_operand.vmem [shape: f32[2,8,256], index: 0, kind: input, shape index: {}]
  %s1 = inlined_call_operand.vmem [shape: bf16[8,8], index: 1, kind: input, shape index: {}]
  %s2 = inlined_call_operand.vmem [shape: f32[8,1], index: 2, kind: input, shape index: {}]
  %s3 = inlined_call_operand.vmem [shape: bf16[16,8], index: 3, kind: input, shape index: {}]
  %s4 = inlined_call_operand.vmem [shape: f32[16,1], index: 4, kind: input, shape index: {}]
  %s5 = inlined_call_operand.vmem [shape: bf16[32,16], index: 5, kind: input, shape index: {}]
  %s6 = inlined_call_operand.vmem [shape: f32[32,1], index: 6, kind: input, shape index: {}]
  %s7 = inlined_call_operand.vmem [shape: bf16[256,64], index: 7, kind: input, shape index: {}]
  %s8 = inlined_call_operand.vmem [shape: bf16[64,16], index: 8, kind: input, shape index: {}]
  %s9 = inlined_call_operand.vmem [shape: bf16[32,32], index: 9, kind: input, shape index: {}]
  %s10 = inlined_call_operand.vmem [shape: f32[32,1], index: 10, kind: input, shape index: {}]
  %s11 = inlined_call_operand.vmem [shape: bf16[48,32], index: 11, kind: input, shape index: {}]
  %s12 = inlined_call_operand.vmem [shape: f32[48,1], index: 12, kind: input, shape index: {}]
  %s13 = inlined_call_operand.vmem [shape: bf16[16,64], index: 13, kind: input, shape index: {}]
  %s14 = inlined_call_operand.vmem [shape: bf16[32,32], index: 14, kind: input, shape index: {}]
  %s15 = inlined_call_operand.vmem [shape: f32[32,1], index: 15, kind: input, shape index: {}]
  %s16 = inlined_call_operand.vmem [shape: bf16[48,32], index: 16, kind: input, shape index: {}]
  %s17 = inlined_call_operand.vmem [shape: f32[48,1], index: 17, kind: input, shape index: {}]
  %s18 = inlined_call_operand.vmem [shape: bf16[64,256], index: 18, kind: input, shape index: {}]
  %s19 = inlined_call_operand.vmem [shape: bf16[32,24], index: 19, kind: input, shape index: {}]
  %s20 = inlined_call_operand.vmem [shape: f32[32,1], index: 20, kind: input, shape index: {}]
  %s21 = inlined_call_operand.vmem [shape: bf16[48,32], index: 21, kind: input, shape index: {}]
  %s22 = inlined_call_operand.vmem [shape: f32[48,1], index: 22, kind: input, shape index: {}]
  %s23 = inlined_call_operand.vmem [shape: f32[2,32,256], index: 23, kind: output, shape index: {}]
  %s24 = sld [smem:[#allocation0]]
  $region125: #{dedode_descriptor_forward.1} parent=0
    _
  %s26 = ssub.s32 1, %s24
  %s27 = scalar_select 0, %s26, %s24
  loop: start=0, step=1, limit=4
  $region2: #{dedode_descriptor_forward.1} parent=0 // loop_pre_header
    _
  $region3: #{dedode_descriptor_forward.1} parent=0 // loop_header
    %s29 = sphi 0, %s33
    %p30 = scmp.ge.s32.totalorder %s29, 4
    %s39 = sphi 0, %s41
    %s42 = sphi 0, %s39
    %s43 = sphi 0, %s42
    %s59 = sphi 0, %s43
    %s63 = sphi 0, %s63
    %s65 = sphi 0, %s63
    %s66 = sphi 0, %s65
    %s80 = sphi 0, %s66
    %s84 = sphi 0, %s84
    %s86 = sphi 0, %s84
    %s87 = sphi 0, %s86
    %s101 = sphi 0, %s87
    %s105 = sphi 0, %s105
    %s107 = sphi 0, %s105
    %s108 = sphi 0, %s107
    %s122 = sphi 0, %s108
    %s126 = sphi 0, %s126
    %s128 = sphi 0, %s126
    %s129 = sphi 0, %s128
    %s143 = sphi 0, %s129
    %s147 = sphi 0, %s147
    %s149 = sphi 0, %s147
    %s150 = sphi 0, %s149
    %s164 = sphi 0, %s150
    %s168 = sphi 0, %s168
    %s170 = sphi 0, %s168
    %s171 = sphi 0, %s170
    %s185 = sphi 0, %s171
    %s189 = sphi 0, %s189
    %s191 = sphi 0, %s189
    %s192 = sphi 0, %s191
    %s206 = sphi 0, %s192
    %s210 = sphi 0, %s210
    %s212 = sphi 0, %s210
    %s213 = sphi 0, %s212
    %s227 = sphi 0, %s213
    %s231 = sphi 0, %s231
    %s233 = sphi 0, %s231
    %s234 = sphi 0, %s233
    %s248 = sphi 0, %s234
    %s252 = sphi 0, %s252
    %s254 = sphi 0, %s252
    %s255 = sphi 0, %s254
    %s269 = sphi 0, %s255
    %s273 = sphi 0, %s273
    %s275 = sphi 0, %s273
    %s276 = sphi 0, %s275
    %s290 = sphi 0, %s276
    %s294 = sphi 0, %s294
    %s296 = sphi 0, %s294
    %s297 = sphi 0, %s296
    %s311 = sphi 0, %s297
    %s315 = sphi 0, %s315
    %s317 = sphi 0, %s315
    %s318 = sphi 0, %s317
    %s332 = sphi 0, %s318
    %s336 = sphi 0, %s336
    %s338 = sphi 0, %s336
    %s339 = sphi 0, %s338
    %s353 = sphi 0, %s339
    %s357 = sphi 0, %s357
    %s359 = sphi 0, %s357
    %s360 = sphi 0, %s359
    %s374 = sphi 0, %s360
    %s378 = sphi 0, %s378
    %s380 = sphi 0, %s378
    %s381 = sphi 0, %s380
    %s395 = sphi 0, %s381
    %s399 = sphi 0, %s399
    %s401 = sphi 0, %s399
    %s402 = sphi 0, %s401
    %s416 = sphi 0, %s402
    %s420 = sphi 0, %s420
    %s422 = sphi 0, %s420
    %s423 = sphi 0, %s422
    %s437 = sphi 0, %s423
    %s441 = sphi 0, %s441
    %s443 = sphi 0, %s441
    %s444 = sphi 0, %s443
    %s458 = sphi 0, %s444
    %s462 = sphi 0, %s462
    %s464 = sphi 0, %s462
    %s465 = sphi 0, %s464
    %s479 = sphi 0, %s465
    %s483 = sphi 0, %s483
    %s485 = sphi 0, %s483
    %s486 = sphi 0, %s485
    %s500 = sphi 0, %s486
    %s504 = sphi 0, %s504
    %s506 = sphi 0, %s504
    %s507 = sphi 0, %s506
    %s521 = sphi 0, %s507
    %s527 = sphi 0, %s529
    %s530 = sphi 0, %s527
    %s531 = sphi 0, %s530
    %s547 = sphi 0, %s531
  $region4: #{dedode_descriptor_forward.1} parent=0 // loop_header_branch
    %32 = sbr.rel (%p30) target = $region8
  $region5: #{dedode_descriptor_forward.1} parent=0 // loop_body
    %s34 = ssub.s32 %s29, 1
    %s35 = ssub.s32 %s29, 2
    %s36 = sadd.s32 %s29, 1
    %s37 = ssub.s32 %s29, %s36
    %p38 = scmp.eq.s32.totalorder %s37, 0
    %s40 = sadd.s32 %s39, 1
    %s41 = scalar_select %p38, %s39, %s40
    %p44 = pneg %p38
    %p45 = scmp.eq.s32.totalorder %s29, 1
    %p46 = por %p44, %p45
    %p47 = scmp.ne.s32.totalorder %s39, %s42
    %p48 = scmp.eq.s32.totalorder %s29, 0
    %p49 = por %p47, %p48
    %p50 = scmp.ne.s32.totalorder %s39, %s42
    %p51 = scmp.eq.s32.totalorder %s34, 1
    %p52 = por %p50, %p51
    %p53 = scmp.ne.s32.totalorder %s42, %s43
    %p54 = scmp.eq.s32.totalorder %s34, 0
    %p55 = por %p53, %p54
    %p56 = scmp.ne.s32.totalorder %s42, %s43
    %p57 = scmp.eq.s32.totalorder %s35, 1
    %p58 = por %p56, %p57
    %p60 = scmp.ne.s32.totalorder %s43, %s59
    %p61 = scmp.eq.s32.totalorder %s35, 0
    %p62 = por %p60, %p61
    %s64 = sadd.s32 %s63, 1
    %p67 = scmp.eq.s32.totalorder %s29, 1
    %p68 = scmp.ne.s32.totalorder %s63, %s65
    %p69 = scmp.eq.s32.totalorder %s29, 0
    %p70 = por %p68, %p69
    %p71 = scmp.ne.s32.totalorder %s63, %s65
    %p72 = scmp.eq.s32.totalorder %s34, 1
    %p73 = por %p71, %p72
    %p74 = scmp.ne.s32.totalorder %s65, %s66
    %p75 = scmp.eq.s32.totalorder %s34, 0
    %p76 = por %p74, %p75
    %p77 = scmp.ne.s32.totalorder %s65, %s66
    %p78 = scmp.eq.s32.totalorder %s35, 1
    %p79 = por %p77, %p78
    %p81 = scmp.ne.s32.totalorder %s66, %s80
    %p82 = scmp.eq.s32.totalorder %s35, 0
    %p83 = por %p81, %p82
    %s85 = sadd.s32 %s84, 1
    %p88 = scmp.eq.s32.totalorder %s29, 1
    %p89 = scmp.ne.s32.totalorder %s84, %s86
    %p90 = scmp.eq.s32.totalorder %s29, 0
    %p91 = por %p89, %p90
    %p92 = scmp.ne.s32.totalorder %s84, %s86
    %p93 = scmp.eq.s32.totalorder %s34, 1
    %p94 = por %p92, %p93
    %p95 = scmp.ne.s32.totalorder %s86, %s87
    %p96 = scmp.eq.s32.totalorder %s34, 0
    %p97 = por %p95, %p96
    %p98 = scmp.ne.s32.totalorder %s86, %s87
    %p99 = scmp.eq.s32.totalorder %s35, 1
    %p100 = por %p98, %p99
    %p102 = scmp.ne.s32.totalorder %s87, %s101
    %p103 = scmp.eq.s32.totalorder %s35, 0
    %p104 = por %p102, %p103
    %s106 = sadd.s32 %s105, 1
    %p109 = scmp.eq.s32.totalorder %s29, 1
    %p110 = scmp.ne.s32.totalorder %s105, %s107
    %p111 = scmp.eq.s32.totalorder %s29, 0
    %p112 = por %p110, %p111
    %p113 = scmp.ne.s32.totalorder %s105, %s107
    %p114 = scmp.eq.s32.totalorder %s34, 1
    %p115 = por %p113, %p114
    %p116 = scmp.ne.s32.totalorder %s107, %s108
    %p117 = scmp.eq.s32.totalorder %s34, 0
    %p118 = por %p116, %p117
    %p119 = scmp.ne.s32.totalorder %s107, %s108
    %p120 = scmp.eq.s32.totalorder %s35, 1
    %p121 = por %p119, %p120
    %p123 = scmp.ne.s32.totalorder %s108, %s122
    %p124 = scmp.eq.s32.totalorder %s35, 0
    %p125 = por %p123, %p124
    %s127 = sadd.s32 %s126, 1
    %p130 = scmp.eq.s32.totalorder %s29, 1
    %p131 = scmp.ne.s32.totalorder %s126, %s128
    %p132 = scmp.eq.s32.totalorder %s29, 0
    %p133 = por %p131, %p132
    %p134 = scmp.ne.s32.totalorder %s126, %s128
    %p135 = scmp.eq.s32.totalorder %s34, 1
    %p136 = por %p134, %p135
    %p137 = scmp.ne.s32.totalorder %s128, %s129
    %p138 = scmp.eq.s32.totalorder %s34, 0
    %p139 = por %p137, %p138
    %p140 = scmp.ne.s32.totalorder %s128, %s129
    %p141 = scmp.eq.s32.totalorder %s35, 1
    %p142 = por %p140, %p141
    %p144 = scmp.ne.s32.totalorder %s129, %s143
    %p145 = scmp.eq.s32.totalorder %s35, 0
    %p146 = por %p144, %p145
    %s148 = sadd.s32 %s147, 1
    %p151 = scmp.eq.s32.totalorder %s29, 1
    %p152 = scmp.ne.s32.totalorder %s147, %s149
    %p153 = scmp.eq.s32.totalorder %s29, 0
    %p154 = por %p152, %p153
    %p155 = scmp.ne.s32.totalorder %s147, %s149
    %p156 = scmp.eq.s32.totalorder %s34, 1
    %p157 = por %p155, %p156
    %p158 = scmp.ne.s32.totalorder %s149, %s150
    %p159 = scmp.eq.s32.totalorder %s34, 0
    %p160 = por %p158, %p159
    %p161 = scmp.ne.s32.totalorder %s149, %s150
    %p162 = scmp.eq.s32.totalorder %s35, 1
    %p163 = por %p161, %p162
    %p165 = scmp.ne.s32.totalorder %s150, %s164
    %p166 = scmp.eq.s32.totalorder %s35, 0
    %p167 = por %p165, %p166
    %s169 = sadd.s32 %s168, 1
    %p172 = scmp.eq.s32.totalorder %s29, 1
    %p173 = scmp.ne.s32.totalorder %s168, %s170
    %p174 = scmp.eq.s32.totalorder %s29, 0
    %p175 = por %p173, %p174
    %p176 = scmp.ne.s32.totalorder %s168, %s170
    %p177 = scmp.eq.s32.totalorder %s34, 1
    %p178 = por %p176, %p177
    %p179 = scmp.ne.s32.totalorder %s170, %s171
    %p180 = scmp.eq.s32.totalorder %s34, 0
    %p181 = por %p179, %p180
    %p182 = scmp.ne.s32.totalorder %s170, %s171
    %p183 = scmp.eq.s32.totalorder %s35, 1
    %p184 = por %p182, %p183
    %p186 = scmp.ne.s32.totalorder %s171, %s185
    %p187 = scmp.eq.s32.totalorder %s35, 0
    %p188 = por %p186, %p187
    %s190 = sadd.s32 %s189, 1
    %p193 = scmp.eq.s32.totalorder %s29, 1
    %p194 = scmp.ne.s32.totalorder %s189, %s191
    %p195 = scmp.eq.s32.totalorder %s29, 0
    %p196 = por %p194, %p195
    %p197 = scmp.ne.s32.totalorder %s189, %s191
    %p198 = scmp.eq.s32.totalorder %s34, 1
    %p199 = por %p197, %p198
    %p200 = scmp.ne.s32.totalorder %s191, %s192
    %p201 = scmp.eq.s32.totalorder %s34, 0
    %p202 = por %p200, %p201
    %p203 = scmp.ne.s32.totalorder %s191, %s192
    %p204 = scmp.eq.s32.totalorder %s35, 1
    %p205 = por %p203, %p204
    %p207 = scmp.ne.s32.totalorder %s192, %s206
    %p208 = scmp.eq.s32.totalorder %s35, 0
    %p209 = por %p207, %p208
    %s211 = sadd.s32 %s210, 1
    %p214 = scmp.eq.s32.totalorder %s29, 1
    %p215 = scmp.ne.s32.totalorder %s210, %s212
    %p216 = scmp.eq.s32.totalorder %s29, 0
    %p217 = por %p215, %p216
    %p218 = scmp.ne.s32.totalorder %s210, %s212
    %p219 = scmp.eq.s32.totalorder %s34, 1
    %p220 = por %p218, %p219
    %p221 = scmp.ne.s32.totalorder %s212, %s213
    %p222 = scmp.eq.s32.totalorder %s34, 0
    %p223 = por %p221, %p222
    %p224 = scmp.ne.s32.totalorder %s212, %s213
    %p225 = scmp.eq.s32.totalorder %s35, 1
    %p226 = por %p224, %p225
    %p228 = scmp.ne.s32.totalorder %s213, %s227
    %p229 = scmp.eq.s32.totalorder %s35, 0
    %p230 = por %p228, %p229
    %s232 = sadd.s32 %s231, 1
    %p235 = scmp.eq.s32.totalorder %s29, 1
    %p236 = scmp.ne.s32.totalorder %s231, %s233
    %p237 = scmp.eq.s32.totalorder %s29, 0
    %p238 = por %p236, %p237
    %p239 = scmp.ne.s32.totalorder %s231, %s233
    %p240 = scmp.eq.s32.totalorder %s34, 1
    %p241 = por %p239, %p240
    %p242 = scmp.ne.s32.totalorder %s233, %s234
    %p243 = scmp.eq.s32.totalorder %s34, 0
    %p244 = por %p242, %p243
    %p245 = scmp.ne.s32.totalorder %s233, %s234
    %p246 = scmp.eq.s32.totalorder %s35, 1
    %p247 = por %p245, %p246
    %p249 = scmp.ne.s32.totalorder %s234, %s248
    %p250 = scmp.eq.s32.totalorder %s35, 0
    %p251 = por %p249, %p250
    %s253 = sadd.s32 %s252, 1
    %p256 = scmp.eq.s32.totalorder %s29, 1
    %p257 = scmp.ne.s32.totalorder %s252, %s254
    %p258 = scmp.eq.s32.totalorder %s29, 0
    %p259 = por %p257, %p258
    %p260 = scmp.ne.s32.totalorder %s252, %s254
    %p261 = scmp.eq.s32.totalorder %s34, 1
    %p262 = por %p260, %p261
    %p263 = scmp.ne.s32.totalorder %s254, %s255
    %p264 = scmp.eq.s32.totalorder %s34, 0
    %p265 = por %p263, %p264
    %p266 = scmp.ne.s32.totalorder %s254, %s255
    %p267 = scmp.eq.s32.totalorder %s35, 1
    %p268 = por %p266, %p267
    %p270 = scmp.ne.s32.totalorder %s255, %s269
    %p271 = scmp.eq.s32.totalorder %s35, 0
    %p272 = por %p270, %p271
    %s274 = sadd.s32 %s273, 1
    %p277 = scmp.eq.s32.totalorder %s29, 1
    %p278 = scmp.ne.s32.totalorder %s273, %s275
    %p279 = scmp.eq.s32.totalorder %s29, 0
    %p280 = por %p278, %p279
    %p281 = scmp.ne.s32.totalorder %s273, %s275
    %p282 = scmp.eq.s32.totalorder %s34, 1
    %p283 = por %p281, %p282
    %p284 = scmp.ne.s32.totalorder %s275, %s276
    %p285 = scmp.eq.s32.totalorder %s34, 0
    %p286 = por %p284, %p285
    %p287 = scmp.ne.s32.totalorder %s275, %s276
    %p288 = scmp.eq.s32.totalorder %s35, 1
    %p289 = por %p287, %p288
    %p291 = scmp.ne.s32.totalorder %s276, %s290
    %p292 = scmp.eq.s32.totalorder %s35, 0
    %p293 = por %p291, %p292
    %s295 = sadd.s32 %s294, 1
    %p298 = scmp.eq.s32.totalorder %s29, 1
    %p299 = scmp.ne.s32.totalorder %s294, %s296
    %p300 = scmp.eq.s32.totalorder %s29, 0
    %p301 = por %p299, %p300
    %p302 = scmp.ne.s32.totalorder %s294, %s296
    %p303 = scmp.eq.s32.totalorder %s34, 1
    %p304 = por %p302, %p303
    %p305 = scmp.ne.s32.totalorder %s296, %s297
    %p306 = scmp.eq.s32.totalorder %s34, 0
    %p307 = por %p305, %p306
    %p308 = scmp.ne.s32.totalorder %s296, %s297
    %p309 = scmp.eq.s32.totalorder %s35, 1
    %p310 = por %p308, %p309
    %p312 = scmp.ne.s32.totalorder %s297, %s311
    %p313 = scmp.eq.s32.totalorder %s35, 0
    %p314 = por %p312, %p313
    %s316 = sadd.s32 %s315, 1
    %p319 = scmp.eq.s32.totalorder %s29, 1
    %p320 = scmp.ne.s32.totalorder %s315, %s317
    %p321 = scmp.eq.s32.totalorder %s29, 0
    %p322 = por %p320, %p321
    %p323 = scmp.ne.s32.totalorder %s315, %s317
    %p324 = scmp.eq.s32.totalorder %s34, 1
    %p325 = por %p323, %p324
    %p326 = scmp.ne.s32.totalorder %s317, %s318
    %p327 = scmp.eq.s32.totalorder %s34, 0
    %p328 = por %p326, %p327
    %p329 = scmp.ne.s32.totalorder %s317, %s318
    %p330 = scmp.eq.s32.totalorder %s35, 1
    %p331 = por %p329, %p330
    %p333 = scmp.ne.s32.totalorder %s318, %s332
    %p334 = scmp.eq.s32.totalorder %s35, 0
    %p335 = por %p333, %p334
    %s337 = sadd.s32 %s336, 1
    %p340 = scmp.eq.s32.totalorder %s29, 1
    %p341 = scmp.ne.s32.totalorder %s336, %s338
    %p342 = scmp.eq.s32.totalorder %s29, 0
    %p343 = por %p341, %p342
    %p344 = scmp.ne.s32.totalorder %s336, %s338
    %p345 = scmp.eq.s32.totalorder %s34, 1
    %p346 = por %p344, %p345
    %p347 = scmp.ne.s32.totalorder %s338, %s339
    %p348 = scmp.eq.s32.totalorder %s34, 0
    %p349 = por %p347, %p348
    %p350 = scmp.ne.s32.totalorder %s338, %s339
    %p351 = scmp.eq.s32.totalorder %s35, 1
    %p352 = por %p350, %p351
    %p354 = scmp.ne.s32.totalorder %s339, %s353
    %p355 = scmp.eq.s32.totalorder %s35, 0
    %p356 = por %p354, %p355
    %s358 = sadd.s32 %s357, 1
    %p361 = scmp.eq.s32.totalorder %s29, 1
    %p362 = scmp.ne.s32.totalorder %s357, %s359
    %p363 = scmp.eq.s32.totalorder %s29, 0
    %p364 = por %p362, %p363
    %p365 = scmp.ne.s32.totalorder %s357, %s359
    %p366 = scmp.eq.s32.totalorder %s34, 1
    %p367 = por %p365, %p366
    %p368 = scmp.ne.s32.totalorder %s359, %s360
    %p369 = scmp.eq.s32.totalorder %s34, 0
    %p370 = por %p368, %p369
    %p371 = scmp.ne.s32.totalorder %s359, %s360
    %p372 = scmp.eq.s32.totalorder %s35, 1
    %p373 = por %p371, %p372
    %p375 = scmp.ne.s32.totalorder %s360, %s374
    %p376 = scmp.eq.s32.totalorder %s35, 0
    %p377 = por %p375, %p376
    %s379 = sadd.s32 %s378, 1
    %p382 = scmp.eq.s32.totalorder %s29, 1
    %p383 = scmp.ne.s32.totalorder %s378, %s380
    %p384 = scmp.eq.s32.totalorder %s29, 0
    %p385 = por %p383, %p384
    %p386 = scmp.ne.s32.totalorder %s378, %s380
    %p387 = scmp.eq.s32.totalorder %s34, 1
    %p388 = por %p386, %p387
    %p389 = scmp.ne.s32.totalorder %s380, %s381
    %p390 = scmp.eq.s32.totalorder %s34, 0
    %p391 = por %p389, %p390
    %p392 = scmp.ne.s32.totalorder %s380, %s381
    %p393 = scmp.eq.s32.totalorder %s35, 1
    %p394 = por %p392, %p393
    %p396 = scmp.ne.s32.totalorder %s381, %s395
    %p397 = scmp.eq.s32.totalorder %s35, 0
    %p398 = por %p396, %p397
    %s400 = sadd.s32 %s399, 1
    %p403 = scmp.eq.s32.totalorder %s29, 1
    %p404 = scmp.ne.s32.totalorder %s399, %s401
    %p405 = scmp.eq.s32.totalorder %s29, 0
    %p406 = por %p404, %p405
    %p407 = scmp.ne.s32.totalorder %s399, %s401
    %p408 = scmp.eq.s32.totalorder %s34, 1
    %p409 = por %p407, %p408
    %p410 = scmp.ne.s32.totalorder %s401, %s402
    %p411 = scmp.eq.s32.totalorder %s34, 0
    %p412 = por %p410, %p411
    %p413 = scmp.ne.s32.totalorder %s401, %s402
    %p414 = scmp.eq.s32.totalorder %s35, 1
    %p415 = por %p413, %p414
    %p417 = scmp.ne.s32.totalorder %s402, %s416
    %p418 = scmp.eq.s32.totalorder %s35, 0
    %p419 = por %p417, %p418
    %s421 = sadd.s32 %s420, 1
    %p424 = scmp.eq.s32.totalorder %s29, 1
    %p425 = scmp.ne.s32.totalorder %s420, %s422
    %p426 = scmp.eq.s32.totalorder %s29, 0
    %p427 = por %p425, %p426
    %p428 = scmp.ne.s32.totalorder %s420, %s422
    %p429 = scmp.eq.s32.totalorder %s34, 1
    %p430 = por %p428, %p429
    %p431 = scmp.ne.s32.totalorder %s422, %s423
    %p432 = scmp.eq.s32.totalorder %s34, 0
    %p433 = por %p431, %p432
    %p434 = scmp.ne.s32.totalorder %s422, %s423
    %p435 = scmp.eq.s32.totalorder %s35, 1
    %p436 = por %p434, %p435
    %p438 = scmp.ne.s32.totalorder %s423, %s437
    %p439 = scmp.eq.s32.totalorder %s35, 0
    %p440 = por %p438, %p439
    %s442 = sadd.s32 %s441, 1
    %p445 = scmp.eq.s32.totalorder %s29, 1
    %p446 = scmp.ne.s32.totalorder %s441, %s443
    %p447 = scmp.eq.s32.totalorder %s29, 0
    %p448 = por %p446, %p447
    %p449 = scmp.ne.s32.totalorder %s441, %s443
    %p450 = scmp.eq.s32.totalorder %s34, 1
    %p451 = por %p449, %p450
    %p452 = scmp.ne.s32.totalorder %s443, %s444
    %p453 = scmp.eq.s32.totalorder %s34, 0
    %p454 = por %p452, %p453
    %p455 = scmp.ne.s32.totalorder %s443, %s444
    %p456 = scmp.eq.s32.totalorder %s35, 1
    %p457 = por %p455, %p456
    %p459 = scmp.ne.s32.totalorder %s444, %s458
    %p460 = scmp.eq.s32.totalorder %s35, 0
    %p461 = por %p459, %p460
    %s463 = sadd.s32 %s462, 1
    %p466 = scmp.eq.s32.totalorder %s29, 1
    %p467 = scmp.ne.s32.totalorder %s462, %s464
    %p468 = scmp.eq.s32.totalorder %s29, 0
    %p469 = por %p467, %p468
    %p470 = scmp.ne.s32.totalorder %s462, %s464
    %p471 = scmp.eq.s32.totalorder %s34, 1
    %p472 = por %p470, %p471
    %p473 = scmp.ne.s32.totalorder %s464, %s465
    %p474 = scmp.eq.s32.totalorder %s34, 0
    %p475 = por %p473, %p474
    %p476 = scmp.ne.s32.totalorder %s464, %s465
    %p477 = scmp.eq.s32.totalorder %s35, 1
    %p478 = por %p476, %p477
    %p480 = scmp.ne.s32.totalorder %s465, %s479
    %p481 = scmp.eq.s32.totalorder %s35, 0
    %p482 = por %p480, %p481
    %s484 = sadd.s32 %s483, 1
    %p487 = scmp.eq.s32.totalorder %s29, 1
    %p488 = scmp.ne.s32.totalorder %s483, %s485
    %p489 = scmp.eq.s32.totalorder %s29, 0
    %p490 = por %p488, %p489
    %p491 = scmp.ne.s32.totalorder %s483, %s485
    %p492 = scmp.eq.s32.totalorder %s34, 1
    %p493 = por %p491, %p492
    %p494 = scmp.ne.s32.totalorder %s485, %s486
    %p495 = scmp.eq.s32.totalorder %s34, 0
    %p496 = por %p494, %p495
    %p497 = scmp.ne.s32.totalorder %s485, %s486
    %p498 = scmp.eq.s32.totalorder %s35, 1
    %p499 = por %p497, %p498
    %p501 = scmp.ne.s32.totalorder %s486, %s500
    %p502 = scmp.eq.s32.totalorder %s35, 0
    %p503 = por %p501, %p502
    %s505 = sadd.s32 %s504, 1
    %p508 = scmp.eq.s32.totalorder %s29, 1
    %p509 = scmp.ne.s32.totalorder %s504, %s506
    %p510 = scmp.eq.s32.totalorder %s29, 0
    %p511 = por %p509, %p510
    %p512 = scmp.ne.s32.totalorder %s504, %s506
    %p513 = scmp.eq.s32.totalorder %s34, 1
    %p514 = por %p512, %p513
    %p515 = scmp.ne.s32.totalorder %s506, %s507
    %p516 = scmp.eq.s32.totalorder %s34, 0
    %p517 = por %p515, %p516
    %p518 = scmp.ne.s32.totalorder %s506, %s507
    %p519 = scmp.eq.s32.totalorder %s35, 1
    %p520 = por %p518, %p519
    %p522 = scmp.ne.s32.totalorder %s507, %s521
    %p523 = scmp.eq.s32.totalorder %s35, 0
    %p524 = por %p522, %p523
    %s525 = ssub.s32 %s29, %s36
    %p526 = scmp.eq.s32.totalorder %s525, 0
    %s528 = sadd.s32 %s527, 1
    %s529 = scalar_select %p526, %s527, %s528
    %p532 = pneg %p526
    %p533 = scmp.eq.s32.totalorder %s29, 1
    %p534 = por %p532, %p533
    %p535 = scmp.ne.s32.totalorder %s527, %s530
    %p536 = scmp.eq.s32.totalorder %s29, 0
    %p537 = por %p535, %p536
    %p538 = scmp.ne.s32.totalorder %s527, %s530
    %p539 = scmp.eq.s32.totalorder %s34, 1
    %p540 = por %p538, %p539
    %p541 = scmp.ne.s32.totalorder %s530, %s531
    %p542 = scmp.eq.s32.totalorder %s34, 0
    %p543 = por %p541, %p542
    %p544 = scmp.ne.s32.totalorder %s530, %s531
    %p545 = scmp.eq.s32.totalorder %s35, 1
    %p546 = por %p544, %p545
    %p548 = scmp.ne.s32.totalorder %s531, %s547
    %p549 = scmp.eq.s32.totalorder %s35, 0
    %p550 = por %p548, %p549
    %p551 = scmp.le.s32.totalorder 1, %s29
    %p552 = scmp.lt.s32.totalorder %s29, 3
    %p553 = pnand %p551, %p552
    %p554 = pneg %p553
    // Predicated region
    $region9: #{dedode_descriptor_forward.1} parent=5 // pred_check
      _
    $region10: #{dedode_descriptor_forward.1} parent=5 // pred_check_branch
      %556 = sbr.rel (%p553) target = $region12
    $region11: #{dedode_descriptor_forward.1} parent=5 // pred_region
      %s557 = ssub.s32 %s29, 1
      // Predicated region
      $region13: #{dedode_descriptor_forward.1} parent=11 // pred_check
        %p558 = pneg %p76
      $region14: #{dedode_descriptor_forward.1} parent=11 // pred_check_branch
        %560 = sbr.rel (%p558) target = $region16
      $region15: #{dedode_descriptor_forward.1} parent=11 // pred_region
        _
      $region16: #{dedode_descriptor_forward.1} parent=11 // pred_fallthru
        _
      // Predicated region
      $region17: #{dedode_descriptor_forward.1} parent=11 // pred_check
        %p561 = pneg %p97
      $region18: #{dedode_descriptor_forward.1} parent=11 // pred_check_branch
        %563 = sbr.rel (%p561) target = $region20
      $region19: #{dedode_descriptor_forward.1} parent=11 // pred_region
        _
      $region20: #{dedode_descriptor_forward.1} parent=11 // pred_fallthru
        _
      // Predicated region
      $region21: #{dedode_descriptor_forward.1} parent=11 // pred_check
        %p564 = pneg %p118
      $region22: #{dedode_descriptor_forward.1} parent=11 // pred_check_branch
        %566 = sbr.rel (%p564) target = $region24
      $region23: #{dedode_descriptor_forward.1} parent=11 // pred_region
        _
      $region24: #{dedode_descriptor_forward.1} parent=11 // pred_fallthru
        _
      // Predicated region
      $region25: #{dedode_descriptor_forward.1} parent=11 // pred_check
        %p567 = pneg %p139
      $region26: #{dedode_descriptor_forward.1} parent=11 // pred_check_branch
        %569 = sbr.rel (%p567) target = $region28
      $region27: #{dedode_descriptor_forward.1} parent=11 // pred_region
        _
      $region28: #{dedode_descriptor_forward.1} parent=11 // pred_fallthru
        _
      // Predicated region
      $region29: #{dedode_descriptor_forward.1} parent=11 // pred_check
        %p570 = pneg %p160
      $region30: #{dedode_descriptor_forward.1} parent=11 // pred_check_branch
        %572 = sbr.rel (%p570) target = $region32
      $region31: #{dedode_descriptor_forward.1} parent=11 // pred_region
        _
      $region32: #{dedode_descriptor_forward.1} parent=11 // pred_fallthru
        _
      // Predicated region
      $region33: #{dedode_descriptor_forward.1} parent=11 // pred_check
        %p573 = pneg %p181
      $region34: #{dedode_descriptor_forward.1} parent=11 // pred_check_branch
        %575 = sbr.rel (%p573) target = $region36
      $region35: #{dedode_descriptor_forward.1} parent=11 // pred_region
        _
      $region36: #{dedode_descriptor_forward.1} parent=11 // pred_fallthru
        _
      // Predicated region
      $region37: #{dedode_descriptor_forward.1} parent=11 // pred_check
        %p576 = pneg %p202
      $region38: #{dedode_descriptor_forward.1} parent=11 // pred_check_branch
        %578 = sbr.rel (%p576) target = $region40
      $region39: #{dedode_descriptor_forward.1} parent=11 // pred_region
        _
      $region40: #{dedode_descriptor_forward.1} parent=11 // pred_fallthru
        _
      // Predicated region
      $region41: #{dedode_descriptor_forward.1} parent=11 // pred_check
        %p579 = pneg %p223
      $region42: #{dedode_descriptor_forward.1} parent=11 // pred_check_branch
        %581 = sbr.rel (%p579) target = $region44
      $region43: #{dedode_descriptor_forward.1} parent=11 // pred_region
        _
      $region44: #{dedode_descriptor_forward.1} parent=11 // pred_fallthru
        _
      // Predicated region
      $region45: #{dedode_descriptor_forward.1} parent=11 // pred_check
        %p582 = pneg %p244
      $region46: #{dedode_descriptor_forward.1} parent=11 // pred_check_branch
        %584 = sbr.rel (%p582) target = $region48
      $region47: #{dedode_descriptor_forward.1} parent=11 // pred_region
        _
      $region48: #{dedode_descriptor_forward.1} parent=11 // pred_fallthru
        _
      // Predicated region
      $region49: #{dedode_descriptor_forward.1} parent=11 // pred_check
        %p585 = pneg %p265
      $region50: #{dedode_descriptor_forward.1} parent=11 // pred_check_branch
        %587 = sbr.rel (%p585) target = $region52
      $region51: #{dedode_descriptor_forward.1} parent=11 // pred_region
        _
      $region52: #{dedode_descriptor_forward.1} parent=11 // pred_fallthru
        _
      // Predicated region
      $region53: #{dedode_descriptor_forward.1} parent=11 // pred_check
        %p588 = pneg %p286
      $region54: #{dedode_descriptor_forward.1} parent=11 // pred_check_branch
        %590 = sbr.rel (%p588) target = $region56
      $region55: #{dedode_descriptor_forward.1} parent=11 // pred_region
        _
      $region56: #{dedode_descriptor_forward.1} parent=11 // pred_fallthru
        _
      // Predicated region
      $region57: #{dedode_descriptor_forward.1} parent=11 // pred_check
        %p591 = pneg %p307
      $region58: #{dedode_descriptor_forward.1} parent=11 // pred_check_branch
        %593 = sbr.rel (%p591) target = $region60
      $region59: #{dedode_descriptor_forward.1} parent=11 // pred_region
        _
      $region60: #{dedode_descriptor_forward.1} parent=11 // pred_fallthru
        _
      // Predicated region
      $region61: #{dedode_descriptor_forward.1} parent=11 // pred_check
        %p594 = pneg %p328
      $region62: #{dedode_descriptor_forward.1} parent=11 // pred_check_branch
        %596 = sbr.rel (%p594) target = $region64
      $region63: #{dedode_descriptor_forward.1} parent=11 // pred_region
        _
      $region64: #{dedode_descriptor_forward.1} parent=11 // pred_fallthru
        _
      // Predicated region
      $region65: #{dedode_descriptor_forward.1} parent=11 // pred_check
        %p597 = pneg %p349
      $region66: #{dedode_descriptor_forward.1} parent=11 // pred_check_branch
        %599 = sbr.rel (%p597) target = $region68
      $region67: #{dedode_descriptor_forward.1} parent=11 // pred_region
        _
      $region68: #{dedode_descriptor_forward.1} parent=11 // pred_fallthru
        _
      // Predicated region
      $region69: #{dedode_descriptor_forward.1} parent=11 // pred_check
        %p600 = pneg %p370
      $region70: #{dedode_descriptor_forward.1} parent=11 // pred_check_branch
        %602 = sbr.rel (%p600) target = $region72
      $region71: #{dedode_descriptor_forward.1} parent=11 // pred_region
        _
      $region72: #{dedode_descriptor_forward.1} parent=11 // pred_fallthru
        _
      // Predicated region
      $region73: #{dedode_descriptor_forward.1} parent=11 // pred_check
        %p603 = pneg %p391
      $region74: #{dedode_descriptor_forward.1} parent=11 // pred_check_branch
        %605 = sbr.rel (%p603) target = $region76
      $region75: #{dedode_descriptor_forward.1} parent=11 // pred_region
        _
      $region76: #{dedode_descriptor_forward.1} parent=11 // pred_fallthru
        _
      // Predicated region
      $region77: #{dedode_descriptor_forward.1} parent=11 // pred_check
        %p606 = pneg %p412
      $region78: #{dedode_descriptor_forward.1} parent=11 // pred_check_branch
        %608 = sbr.rel (%p606) target = $region80
      $region79: #{dedode_descriptor_forward.1} parent=11 // pred_region
        _
      $region80: #{dedode_descriptor_forward.1} parent=11 // pred_fallthru
        _
      // Predicated region
      $region81: #{dedode_descriptor_forward.1} parent=11 // pred_check
        %p609 = pneg %p433
      $region82: #{dedode_descriptor_forward.1} parent=11 // pred_check_branch
        %611 = sbr.rel (%p609) target = $region84
      $region83: #{dedode_descriptor_forward.1} parent=11 // pred_region
        _
      $region84: #{dedode_descriptor_forward.1} parent=11 // pred_fallthru
        _
      // Predicated region
      $region85: #{dedode_descriptor_forward.1} parent=11 // pred_check
        %p612 = pneg %p454
      $region86: #{dedode_descriptor_forward.1} parent=11 // pred_check_branch
        %614 = sbr.rel (%p612) target = $region88
      $region87: #{dedode_descriptor_forward.1} parent=11 // pred_region
        _
      $region88: #{dedode_descriptor_forward.1} parent=11 // pred_fallthru
        _
      // Predicated region
      $region89: #{dedode_descriptor_forward.1} parent=11 // pred_check
        %p615 = pneg %p475
      $region90: #{dedode_descriptor_forward.1} parent=11 // pred_check_branch
        %617 = sbr.rel (%p615) target = $region92
      $region91: #{dedode_descriptor_forward.1} parent=11 // pred_region
        _
      $region92: #{dedode_descriptor_forward.1} parent=11 // pred_fallthru
        _
      // Predicated region
      $region93: #{dedode_descriptor_forward.1} parent=11 // pred_check
        %p618 = pneg %p496
      $region94: #{dedode_descriptor_forward.1} parent=11 // pred_check_branch
        %620 = sbr.rel (%p618) target = $region96
      $region95: #{dedode_descriptor_forward.1} parent=11 // pred_region
        _
      $region96: #{dedode_descriptor_forward.1} parent=11 // pred_fallthru
        _
      // Predicated region
      $region97: #{dedode_descriptor_forward.1} parent=11 // pred_check
        %p621 = pneg %p517
      $region98: #{dedode_descriptor_forward.1} parent=11 // pred_check_branch
        %623 = sbr.rel (%p621) target = $region100
      $region99: #{dedode_descriptor_forward.1} parent=11 // pred_region
        _
      $region100: #{dedode_descriptor_forward.1} parent=11 // pred_fallthru
        _
    $region12: #{dedode_descriptor_forward.1} parent=5 // pred_fallthru
      _
    %p624 = scmp.lt.s32.totalorder %s29, 2
    // Predicated region
    $region101: #{dedode_descriptor_forward.1} parent=5 // pred_check
      %p625 = pneg %p624
    $region102: #{dedode_descriptor_forward.1} parent=5 // pred_check_branch
      %627 = sbr.rel (%p625) target = $region104
    $region103: #{dedode_descriptor_forward.1} parent=5 // pred_region
      // Predicated region
      $region105: #{dedode_descriptor_forward.1} parent=103 // pred_check
        %p628 = pneg %p49
      $region106: #{dedode_descriptor_forward.1} parent=103 // pred_check_branch
        %630 = sbr.rel (%p628) target = $region108
      $region107: #{dedode_descriptor_forward.1} parent=103 // pred_region
        %p631 = scmp.lt.s32.totalorder %s29, 1
        %s632 = scalar_select %p631, %s29, 1
        %s633 = smul.addr %s632, 2
        %s634 = smul.addr %s633, 8
        %s635 = scalar_lea.vmem %s0, %s634
      $region108: #{dedode_descriptor_forward.1} parent=103 // pred_fallthru
        _
    $region104: #{dedode_descriptor_forward.1} parent=5 // pred_fallthru
      _
    %p636 = scmp.le.s32.totalorder 1, %s29
    %p637 = scmp.lt.s32.totalorder %s29, 3
    %p638 = pnand %p636, %p637
    %p639 = pneg %p638
    // Predicated region
    $region109: #{dedode_descriptor_forward.1} parent=5 // pred_check
      _
    $region110: #{dedode_descriptor_forward.1} parent=5 // pred_check_branch
      %641 = sbr.rel (%p638) target = $region112
    $region111: #{dedode_descriptor_forward.1} parent=5 // pred_region
      %s642 = ssub.s32 %s29, 1
      %p643 = scmp.lt.s32.totalorder %s34, 1
      %s644 = scalar_select %p643, %s34, 1
      %s645 = smul.addr %s644, 2
      %s646 = smul.addr %s645, 8
      %s647 = scalar_lea.vmem %s0, %s646
      %p648 = pneg %p55
      %p649 = pneg %p52
      %p650 = pneg %p76
      %p651 = pneg %p73
      %p652 = pneg %p97
      %p653 = pneg %p94
      %p654 = pneg %p118
      %p655 = pneg %p115
      %p656 = pneg %p139
      %p657 = pneg %p136
      %p658 = pneg %p160
      %p659 = pneg %p157
      %p660 = pneg %p181
      %p661 = pneg %p178
      %p662 = pneg %p202
      %p663 = pneg %p199
      %p664 = pneg %p223
      %p665 = pneg %p220
      %p666 = pneg %p244
      %p667 = pneg %p241
      %p668 = pneg %p265
      %p669 = pneg %p262
      %p670 = pneg %p286
      %p671 = pneg %p283
      %p672 = pneg %p307
      %p673 = pneg %p304
      %p674 = pneg %p328
      %p675 = pneg %p325
      %p676 = pneg %p349
      %p677 = pneg %p346
      %p678 = pneg %p370
      %p679 = pneg %p367
      %p680 = pneg %p391
      %p681 = pneg %p388
      %p682 = pneg %p412
      %p683 = pneg %p409
      %p684 = pneg %p433
      %p685 = pneg %p430
      %p686 = pneg %p454
      %p687 = pneg %p451
      %p688 = pneg %p475
      %p689 = pneg %p472
      %p690 = pneg %p496
      %p691 = pneg %p493
      %p692 = pneg %p517
      %p693 = pneg %p514
      %p694 = pneg %p543
      %p695 = pneg %p540
      %p696 = scmp.lt.s32.totalorder %s34, 1
      %s697 = scalar_select %p696, %s34, 1
      %s698 = smul.addr %s697, 8
      %s699 = smul.addr %s698, 8
      %s700 = scalar_lea.vmem %s23, %s699
      %p701 = scmp.lt.s32.totalorder %s34, 1
      %s702 = scalar_select %p701, %s34, 1
      %s703 = smul.addr %s702, 2
      %s704 = smul.addr %s703, 8
      %s705 = scalar_lea.vmem %s0, %s704
      %p706 = scmp.lt.s32.totalorder %s34, 1
      %s707 = scalar_select %p706, %s34, 1
      %s708 = smul.addr %s707, 8
      %s709 = smul.addr %s708, 8
      %s710 = scalar_lea.vmem %s23, %s709
      %v712 = vld [vmem:[%s705] sm:$0xff]
      %v713 = vld [vmem:[%s705 + $0x8] sm:$0xff]
      %v714 = vld [vmem:[%s1] sm:$0xf]
      %v715 = vpack.c.bf16 %v712, %v712
      %v716 = vpack.c.bf16 %v713, %v713
      %v717 = vld [vmem:[%s2] sm:$0xff]
      %719 = vset.pattern.permute.xlu0 0
      %720 = vperm.xlu0 %719, %v717
      %v721 = vpop.permute.xlu0 %720
      %vm723 = vcmask 64512
      %v725 = vsel %vm723, %v714, 0
      %vm727 = vcmask 1043456
      %v729 = vsel %vm727, %v715, 0
      %v732 = vsel %vm727, %v716, 0
      %734 = vmatprep.subr.bf16.mxu0 0
      %735 = vmatpush1.bf16.msra.mxu0 0
      %736 = vmatprep.subr.bf16.mxu0 0
      %737 = vmatpush1.bf16.msra.mxu0 0
      %738 = vmatprep.subr.bf16.mxu0 0
      %739 = vmatpush1.bf16.msra.mxu0 0
      %740 = vmatprep.subr.bf16.mxu0 0
      %741 = vmatpush1.bf16.msra.mxu0 0
      %742 = vmatprep.subr.bf16.mxu0 0
      %743 = vmatpush1.bf16.msra.mxu0 0
      %744 = vmatprep.subr.bf16.mxu0 0
      %745 = vmatpush1.bf16.msra.mxu0 0
      %746 = vmatprep.subr.bf16.mxu0 0
      %747 = vmatpush1.bf16.msra.mxu0 0
      %748 = vmatprep.subr.bf16.mxu0 %v732
      %749 = vmatpush1.bf16.msra.mxu0 %v729
      %750 = vmatprep.subr.bf16.mxu0 0
      %751 = vmatpush2.bf16.msra.mxu0 0
      %752 = vmatprep.subr.bf16.mxu0 0
      %753 = vmatpush2.bf16.msra.mxu0 0
      %754 = vmatprep.subr.bf16.mxu0 0
      %755 = vmatpush2.bf16.msra.mxu0 0
      %756 = vmatprep.subr.bf16.mxu0 0
      %757 = vmatpush2.bf16.msra.mxu0 0
      %758 = vmatprep.subr.bf16.mxu0 0
      %759 = vmatpush2.bf16.msra.mxu0 0
      %760 = vmatprep.subr.bf16.mxu0 0
      %761 = vmatpush2.bf16.msra.mxu0 0
      %762 = vmatprep.subr.bf16.mxu0 0
      %763 = vmatpush2.bf16.msra.mxu0 0
      %764 = vmatprep.subr.bf16.mxu0 0
      %765 = vmatpush2.bf16.msra.mxu0 0
      %766 = vmatprep.mubr.bf16.mxu0 0
      %767 = vmatmul.mubr.bf16.gmra.mxu0 %v725
      %v768 = vpop.f32.mrf.mxu0
      %v769 = vadd.f32 %v721, %v768
      %v770 = vpop.f32.mrf.mxu0
      %v771 = vadd.f32 %v721, %v770
      %v772 = vpop.f32.mrf.mxu0
      %v773 = vpop.f32.mrf.mxu0
      %774 = vdwg.mxu0
      %v775 = vmax.f32 %v769, 0.0
      %v776 = vmax.f32 %v771, 0.0
      %v777 = vld [vmem:[%s7] sm:$0xf]
      %v778 = vld [vmem:[%s7 + $0x4] sm:$0xf]
      %v779 = vld [vmem:[%s7 + $0x8] sm:$0xf]
      %v780 = vld [vmem:[%s7 + $0xc] sm:$0xf]
      %v781 = vld [vmem:[%s7 + $0x10] sm:$0xf]
      %v782 = vld [vmem:[%s7 + $0x14] sm:$0xf]
      %v783 = vld [vmem:[%s7 + $0x18] sm:$0xf]
      %v784 = vld [vmem:[%s7 + $0x1c] sm:$0xf]
      %v785 = vld [vmem:[%s7 + $0x20] sm:$0xf]
      %v786 = vld [vmem:[%s7 + $0x24] sm:$0xf]
      %v787 = vld [vmem:[%s7 + $0x28] sm:$0xf]
      %v788 = vld [vmem:[%s7 + $0x2c] sm:$0xf]
      %v789 = vld [vmem:[%s7 + $0x30] sm:$0xf]
      %v790 = vld [vmem:[%s7 + $0x34] sm:$0xf]
      %v791 = vld [vmem:[%s7 + $0x38] sm:$0xf]
      %v792 = vld [vmem:[%s7 + $0x3c] sm:$0xf]
      %v793 = vld [vmem:[%s7 + $0x40] sm:$0xf]
      %v794 = vld [vmem:[%s7 + $0x44] sm:$0xf]
      %v795 = vld [vmem:[%s7 + $0x48] sm:$0xf]
      %v796 = vld [vmem:[%s7 + $0x4c] sm:$0xf]
      %v797 = vld [vmem:[%s7 + $0x50] sm:$0xf]
      %v798 = vld [vmem:[%s7 + $0x54] sm:$0xf]
      %v799 = vld [vmem:[%s7 + $0x58] sm:$0xf]
      %v800 = vld [vmem:[%s7 + $0x5c] sm:$0xf]
      %v801 = vld [vmem:[%s7 + $0x60] sm:$0xf]
      %v802 = vld [vmem:[%s7 + $0x64] sm:$0xf]
      %v803 = vld [vmem:[%s7 + $0x68] sm:$0xf]
      %v804 = vld [vmem:[%s7 + $0x6c] sm:$0xf]
      %v805 = vld [vmem:[%s7 + $0x70] sm:$0xf]
      %v806 = vld [vmem:[%s7 + $0x74] sm:$0xf]
      %v807 = vld [vmem:[%s7 + $0x78] sm:$0xf]
      %v808 = vld [vmem:[%s7 + $0x7c] sm:$0xf]
      %v809 = vpack.c.bf16 %v775, %v775
      %v810 = vpack.c.bf16 %v776, %v776
      %v843 = vunpack.c.l.b16 %v777
      %v844 = vunpack.c.l.b16 %v778
      %v845 = vunpack.c.l.b16 %v779
      %v846 = vunpack.c.l.b16 %v780
      %v847 = vunpack.c.l.b16 %v781
      %v848 = vunpack.c.l.b16 %v782
      %v849 = vunpack.c.l.b16 %v783
      %v850 = vunpack.c.l.b16 %v784
      %v851 = vunpack.c.l.b16 %v785
      %v852 = vunpack.c.l.b16 %v786
      %v853 = vunpack.c.l.b16 %v787
      %v854 = vunpack.c.l.b16 %v788
      %v855 = vunpack.c.l.b16 %v789
      %v856 = vunpack.c.l.b16 %v790
      %v857 = vunpack.c.l.b16 %v791
      %v858 = vunpack.c.l.b16 %v792
      %v859 = vunpack.c.l.b16 %v793
      %v860 = vunpack.c.l.b16 %v794
      %v861 = vunpack.c.l.b16 %v795
      %v862 = vunpack.c.l.b16 %v796
      %v863 = vunpack.c.l.b16 %v797
      %v864 = vunpack.c.l.b16 %v798
      %v865 = vunpack.c.l.b16 %v799
      %v866 = vunpack.c.l.b16 %v800
      %v867 = vunpack.c.l.b16 %v801
      %v868 = vunpack.c.l.b16 %v802
      %v869 = vunpack.c.l.b16 %v803
      %v870 = vunpack.c.l.b16 %v804
      %v871 = vunpack.c.l.b16 %v805
      %v872 = vunpack.c.l.b16 %v806
      %v873 = vunpack.c.l.b16 %v807
      %v874 = vunpack.c.l.b16 %v808
      %v875 = vpack.c.b16 %v844, %v843
      %v876 = vpack.c.b16 %v846, %v845
      %v877 = vpack.c.b16 %v848, %v847
      %v878 = vpack.c.b16 %v850, %v849
      %v879 = vpack.c.b16 %v852, %v851
      %v880 = vpack.c.b16 %v854, %v853
      %v881 = vpack.c.b16 %v856, %v855
      %v882 = vpack.c.b16 %v858, %v857
      %v883 = vpack.c.b16 %v860, %v859
      %v884 = vpack.c.b16 %v862, %v861
      %v885 = vpack.c.b16 %v864, %v863
      %v886 = vpack.c.b16 %v866, %v865
      %v887 = vpack.c.b16 %v868, %v867
      %v888 = vpack.c.b16 %v870, %v869
      %v889 = vpack.c.b16 %v872, %v871
      %v890 = vpack.c.b16 %v874, %v873
      %907 = vmatprep.subr.bf16.mxu0 0
      %908 = vmatpush1.bf16.msra.mxu0 %v882
      %909 = vmatprep.subr.bf16.mxu0 0
      %910 = vmatpush1.bf16.msra.mxu0 %v881
      %911 = vmatprep.subr.bf16.mxu0 0
      %912 = vmatpush1.bf16.msra.mxu0 %v880
      %913 = vmatprep.subr.bf16.mxu0 0
      %914 = vmatpush1.bf16.msra.mxu0 %v879
      %915 = vmatprep.subr.bf16.mxu0 0
      %916 = vmatpush1.bf16.msra.mxu0 %v878
      %917 = vmatprep.subr.bf16.mxu0 0
      %918 = vmatpush1.bf16.msra.mxu0 %v877
      %919 = vmatprep.subr.bf16.mxu0 0
      %920 = vmatpush1.bf16.msra.mxu0 %v876
      %921 = vmatprep.subr.bf16.mxu0 0
      %922 = vmatpush1.bf16.msra.mxu0 %v875
      %923 = vmatprep.subr.bf16.mxu0 0
      %924 = vmatpush2.bf16.msra.mxu0 %v890
      %925 = vmatprep.subr.bf16.mxu0 0
      %926 = vmatpush2.bf16.msra.mxu0 %v889
      %927 = vmatprep.subr.bf16.mxu0 0
      %928 = vmatpush2.bf16.msra.mxu0 %v888
      %929 = vmatprep.subr.bf16.mxu0 0
      %930 = vmatpush2.bf16.msra.mxu0 %v887
      %931 = vmatprep.subr.bf16.mxu0 0
      %932 = vmatpush2.bf16.msra.mxu0 %v886
      %933 = vmatprep.subr.bf16.mxu0 0
      %934 = vmatpush2.bf16.msra.mxu0 %v885
      %935 = vmatprep.subr.bf16.mxu0 0
      %936 = vmatpush2.bf16.msra.mxu0 %v884
      %937 = vmatprep.subr.bf16.mxu0 0
      %938 = vmatpush2.bf16.msra.mxu0 %v883
      %939 = vmatprep.mubr.bf16.mxu0 %v810
      %940 = vmatmul.mubr.bf16.gmra.mxu0 %v809
      %v941 = vpop.f32.mrf.mxu0
      %v942 = vadd.f32 0.0, %v941
      %v943 = vpop.f32.mrf.mxu0
      %v944 = vpop.f32.mrf.mxu0
      %v945 = vpop.f32.mrf.mxu0
      %946 = vdwg.mxu0
      %v947 = vld [vmem:[%s3] sm:$0xf]
      %v948 = vld [vmem:[%s3 + $0x4] sm:$0xf]
      %v949 = vpack.c.bf16 %v942, %v942
      %v950 = vld [vmem:[%s4] sm:$0xff]
      %v951 = vld [vmem:[%s4 + $0x8] sm:$0xff]
      %953 = vset.pattern.permute.xlu0 0
      %954 = vperm.xlu0 %953, %v950
      %v955 = vpop.permute.xlu0 %954
      %958 = vset.pattern.permute.xlu0 0
      %959 = vperm.xlu0 %958, %v951
      %v960 = vpop.permute.xlu0 %959
      %v964 = vunpack.c.l.b16 %v947
      %v965 = vunpack.c.l.b16 %v948
      %v966 = vpack.c.b16 %v965, %v964
      %v968 = vsel %vm723, %v966, 0
      %v971 = vsel %vm727, %v949, 0
      %973 = vmatprep.subr.bf16.mxu0 0
      %974 = vmatpush1.bf16.msra.mxu0 0
      %975 = vmatprep.subr.bf16.mxu0 0
      %976 = vmatpush1.bf16.msra.mxu0 0
      %977 = vmatprep.subr.bf16.mxu0 0
      %978 = vmatpush1.bf16.msra.mxu0 0
      %979 = vmatprep.subr.bf16.mxu0 0
      %980 = vmatpush1.bf16.msra.mxu0 0
      %981 = vmatprep.subr.bf16.mxu0 0
      %982 = vmatpush1.bf16.msra.mxu0 0
      %983 = vmatprep.subr.bf16.mxu0 0
      %984 = vmatpush1.bf16.msra.mxu0 0
      %985 = vmatprep.subr.bf16.mxu0 0
      %986 = vmatpush1.bf16.msra.mxu0 0
      %987 = vmatprep.subr.bf16.mxu0 0
      %988 = vmatpush1.bf16.msra.mxu0 %v971
      %989 = vmatprep.subr.bf16.mxu0 0
      %990 = vmatpush2.bf16.msra.mxu0 0
      %991 = vmatprep.subr.bf16.mxu0 0
      %992 = vmatpush2.bf16.msra.mxu0 0
      %993 = vmatprep.subr.bf16.mxu0 0
      %994 = vmatpush2.bf16.msra.mxu0 0
      %995 = vmatprep.subr.bf16.mxu0 0
      %996 = vmatpush2.bf16.msra.mxu0 0
      %997 = vmatprep.subr.bf16.mxu0 0
      %998 = vmatpush2.bf16.msra.mxu0 0
      %999 = vmatprep.subr.bf16.mxu0 0
      %1000 = vmatpush2.bf16.msra.mxu0 0
      %1001 = vmatprep.subr.bf16.mxu0 0
      %1002 = vmatpush2.bf16.msra.mxu0 0
      %1003 = vmatprep.subr.bf16.mxu0 0
      %1004 = vmatpush2.bf16.msra.mxu0 0
      %1005 = vmatprep.mubr.bf16.mxu0 0
      %1006 = vmatmul.mubr.bf16.gmra.mxu0 %v968
      %v1007 = vpop.f32.mrf.mxu0
      %v1008 = vadd.f32 %v955, %v1007
      %v1009 = vpop.f32.mrf.mxu0
      %v1010 = vpop.f32.mrf.mxu0
      %v1011 = vadd.f32 %v960, %v1010
      %v1012 = vpop.f32.mrf.mxu0
      %1013 = vdwg.mxu0
      %v1014 = vmax.f32 %v1008, 0.0
      %v1015 = vmax.f32 %v1011, 0.0
      %v1016 = vld [vmem:[%s8] sm:$0xf]
      %v1017 = vld [vmem:[%s8 + $0x4] sm:$0xf]
      %v1018 = vld [vmem:[%s8 + $0x8] sm:$0xf]
      %v1019 = vld [vmem:[%s8 + $0xc] sm:$0xf]
      %v1020 = vld [vmem:[%s8 + $0x10] sm:$0xf]
      %v1021 = vld [vmem:[%s8 + $0x14] sm:$0xf]
      %v1022 = vld [vmem:[%s8 + $0x18] sm:$0xf]
      %v1023 = vld [vmem:[%s8 + $0x1c] sm:$0xf]
      %v1024 = vpack.c.bf16 %v1015, %v1014
      %v1033 = vunpack.c.l.b16 %v1016
      %v1034 = vunpack.c.l.b16 %v1017
      %v1035 = vunpack.c.l.b16 %v1018
      %v1036 = vunpack.c.l.b16 %v1019
      %v1037 = vunpack.c.l.b16 %v1020
      %v1038 = vunpack.c.l.b16 %v1021
      %v1039 = vunpack.c.l.b16 %v1022
      %v1040 = vunpack.c.l.b16 %v1023
      %v1041 = vpack.c.b16 %v1034, %v1033
      %v1042 = vpack.c.b16 %v1036, %v1035
      %v1043 = vpack.c.b16 %v1038, %v1037
      %v1044 = vpack.c.b16 %v1040, %v1039
      %vm1049 = vcmask 523264
      %v1051 = vsel %vm1049, %v1024, 0
      %1053 = vmatprep.subr.bf16.mxu0 0
      %1054 = vmatpush1.bf16.msra.mxu0 0
      %1055 = vmatprep.subr.bf16.mxu0 0
      %1056 = vmatpush1.bf16.msra.mxu0 0
      %1057 = vmatprep.subr.bf16.mxu0 0
      %1058 = vmatpush1.bf16.msra.mxu0 0
      %1059 = vmatprep.subr.bf16.mxu0 0
      %1060 = vmatpush1.bf16.msra.mxu0 0
      %1061 = vmatprep.subr.bf16.mxu0 0
      %1062 = vmatpush1.bf16.msra.mxu0 %v1044
      %1063 = vmatprep.subr.bf16.mxu0 0
      %1064 = vmatpush1.bf16.msra.mxu0 %v1043
      %1065 = vmatprep.subr.bf16.mxu0 0
      %1066 = vmatpush1.bf16.msra.mxu0 %v1042
      %1067 = vmatprep.subr.bf16.mxu0 0
      %1068 = vmatpush1.bf16.msra.mxu0 %v1041
      %1069 = vmatprep.subr.bf16.mxu0 0
      %1070 = vmatpush2.bf16.msra.mxu0 0
      %1071 = vmatprep.subr.bf16.mxu0 0
      %1072 = vmatpush2.bf16.msra.mxu0 0
      %1073 = vmatprep.subr.bf16.mxu0 0
      %1074 = vmatpush2.bf16.msra.mxu0 0
      %1075 = vmatprep.subr.bf16.mxu0 0
      %1076 = vmatpush2.bf16.msra.mxu0 0
      %1077 = vmatprep.subr.bf16.mxu0 0
      %1078 = vmatpush2.bf16.msra.mxu0 0
      %1079 = vmatprep.subr.bf16.mxu0 0
      %1080 = vmatpush2.bf16.msra.mxu0 0
      %1081 = vmatprep.subr.bf16.mxu0 0
      %1082 = vmatpush2.bf16.msra.mxu0 0
      %1083 = vmatprep.subr.bf16.mxu0 0
      %1084 = vmatpush2.bf16.msra.mxu0 0
      %1085 = vmatprep.mubr.bf16.mxu0 0
      %1086 = vmatmul.mubr.bf16.gmra.mxu0 %v1051
      %v1087 = vpop.f32.mrf.mxu0
      %v1088 = vadd.f32 0.0, %v1087
      %v1089 = vpop.f32.mrf.mxu0
      %v1090 = vpop.f32.mrf.mxu0
      %v1091 = vadd.f32 0.0, %v1090
      %v1092 = vpop.f32.mrf.mxu0
      %1093 = vdwg.mxu0
      %v1094 = vld [vmem:[%s5] sm:$0xf]
      %v1095 = vld [vmem:[%s5 + $0x4] sm:$0xf]
      %v1096 = vld [vmem:[%s5 + $0x8] sm:$0xf]
      %v1097 = vld [vmem:[%s5 + $0xc] sm:$0xf]
      %v1098 = vpack.c.bf16 %v1091, %v1088
      %v1099 = vld [vmem:[%s6] sm:$0xff]
      %v1100 = vld [vmem:[%s6 + $0x8] sm:$0xff]
      %v1101 = vld [vmem:[%s6 + $0x10] sm:$0xff]
      %v1102 = vld [vmem:[%s6 + $0x18] sm:$0xff]
      %1104 = vset.pattern.permute.xlu0 0
      %1105 = vperm.xlu0 %1104, %v1099
      %v1106 = vpop.permute.xlu0 %1105
      %1109 = vset.pattern.permute.xlu0 0
      %1110 = vperm.xlu0 %1109, %v1100
      %v1111 = vpop.permute.xlu0 %1110
      %1114 = vset.pattern.permute.xlu0 0
      %1115 = vperm.xlu0 %1114, %v1101
      %v1116 = vpop.permute.xlu0 %1115
      %1119 = vset.pattern.permute.xlu0 0
      %1120 = vperm.xlu0 %1119, %v1102
      %v1121 = vpop.permute.xlu0 %1120
      %v1127 = vunpack.c.l.b16 %v1094
      %v1128 = vunpack.c.l.b16 %v1095
      %v1129 = vunpack.c.l.b16 %v1096
      %v1130 = vunpack.c.l.b16 %v1097
      %v1131 = vpack.c.b16 %v1128, %v1127
      %v1132 = vpack.c.b16 %v1130, %v1129
      %vm1133 = vcmask 130048
      %v1135 = vsel %vm1133, %v1131, 0
      %v1138 = vsel %vm1133, %v1132, 0
      %1140 = vmatprep.subr.bf16.mxu0 0
      %1141 = vmatpush1.bf16.msra.mxu0 0
      %1142 = vmatprep.subr.bf16.mxu0 0
      %1143 = vmatpush1.bf16.msra.mxu0 0
      %1144 = vmatprep.subr.bf16.mxu0 0
      %1145 = vmatpush1.bf16.msra.mxu0 0
      %1146 = vmatprep.subr.bf16.mxu0 0
      %1147 = vmatpush1.bf16.msra.mxu0 0
      %1148 = vmatprep.subr.bf16.mxu0 0
      %1149 = vmatpush1.bf16.msra.mxu0 0
      %1150 = vmatprep.subr.bf16.mxu0 0
      %1151 = vmatpush1.bf16.msra.mxu0 0
      %1152 = vmatprep.subr.bf16.mxu0 0
      %1153 = vmatpush1.bf16.msra.mxu0 0
      %1154 = vmatprep.subr.bf16.mxu0 0
      %1155 = vmatpush1.bf16.msra.mxu0 %v1098
      %1156 = vmatprep.subr.bf16.mxu0 0
      %1157 = vmatpush2.bf16.msra.mxu0 0
      %1158 = vmatprep.subr.bf16.mxu0 0
      %1159 = vmatpush2.bf16.msra.mxu0 0
      %1160 = vmatprep.subr.bf16.mxu0 0
      %1161 = vmatpush2.bf16.msra.mxu0 0
      %1162 = vmatprep.subr.bf16.mxu0 0
      %1163 = vmatpush2.bf16.msra.mxu0 0
      %1164 = vmatprep.subr.bf16.mxu0 0
      %1165 = vmatpush2.bf16.msra.mxu0 0
      %1166 = vmatprep.subr.bf16.mxu0 0
      %1167 = vmatpush2.bf16.msra.mxu0 0
      %1168 = vmatprep.subr.bf16.mxu0 0
      %1169 = vmatpush2.bf16.msra.mxu0 0
      %1170 = vmatprep.subr.bf16.mxu0 0
      %1171 = vmatpush2.bf16.msra.mxu0 0
      %1172 = vmatprep.mubr.bf16.mxu0 0
      %1173 = vmatmul.mubr.bf16.gmra.mxu0 %v1135
      %v1174 = vpop.f32.mrf.mxu0
      %v1175 = vadd.f32 %v1106, %v1174
      %v1176 = vpop.f32.mrf.mxu0
      %v1177 = vpop.f32.mrf.mxu0
      %v1178 = vadd.f32 %v1111, %v1177
      %v1179 = vpop.f32.mrf.mxu0
      %1180 = vmatprep.mubr.bf16.mxu0 0
      %1181 = vmatmul.mubr.bf16.gmra.mxu0 %v1138
      %v1182 = vpop.f32.mrf.mxu0
      %v1183 = vadd.f32 %v1116, %v1182
      %v1184 = vpop.f32.mrf.mxu0
      %v1185 = vpop.f32.mrf.mxu0
      %v1186 = vadd.f32 %v1121, %v1185
      %v1187 = vpop.f32.mrf.mxu0
      %1188 = vdwg.mxu0
      %v1189 = vmax.f32 %v1175, 0.0
      %v1190 = vmax.f32 %v1178, 0.0
      %v1191 = vmax.f32 %v1183, 0.0
      %v1192 = vmax.f32 %v1186, 0.0
      %v1193 = vld [vmem:[%s9] sm:$0xf]
      %v1194 = vld [vmem:[%s9 + $0x4] sm:$0xf]
      %v1195 = vld [vmem:[%s9 + $0x8] sm:$0xf]
      %v1196 = vld [vmem:[%s9 + $0xc] sm:$0xf]
      %v1197 = vpack.c.bf16 %v1190, %v1189
      %v1198 = vpack.c.bf16 %v1192, %v1191
      %v1199 = vld [vmem:[%s10] sm:$0xff]
      %v1200 = vld [vmem:[%s10 + $0x8] sm:$0xff]
      %v1201 = vld [vmem:[%s10 + $0x10] sm:$0xff]
      %v1202 = vld [vmem:[%s10 + $0x18] sm:$0xff]
      %1204 = vset.pattern.permute.xlu0 0
      %1205 = vperm.xlu0 %1204, %v1199
      %v1206 = vpop.permute.xlu0 %1205
      %1209 = vset.pattern.permute.xlu0 0
      %1210 = vperm.xlu0 %1209, %v1200
      %v1211 = vpop.permute.xlu0 %1210
      %1214 = vset.pattern.permute.xlu0 0
      %1215 = vperm.xlu0 %1214, %v1201
      %v1216 = vpop.permute.xlu0 %1215
      %1219 = vset.pattern.permute.xlu0 0
      %1220 = vperm.xlu0 %1219, %v1202
      %v1221 = vpop.permute.xlu0 %1220
      %v1227 = vunpack.c.l.b16 %v1193
      %v1228 = vunpack.c.l.b16 %v1194
      %v1229 = vunpack.c.l.b16 %v1195
      %v1230 = vunpack.c.l.b16 %v1196
      %v1231 = vpack.c.b16 %v1228, %v1227
      %v1232 = vpack.c.b16 %v1230, %v1229
      %vm1233 = vcmask 261120
      %v1235 = vsel %vm1233, %v1231, 0
      %v1238 = vsel %vm1233, %v1232, 0
      %1240 = vmatprep.subr.bf16.mxu0 0
      %1241 = vmatpush1.bf16.msra.mxu0 0
      %1242 = vmatprep.subr.bf16.mxu0 0
      %1243 = vmatpush1.bf16.msra.mxu0 0
      %1244 = vmatprep.subr.bf16.mxu0 0
      %1245 = vmatpush1.bf16.msra.mxu0 0
      %1246 = vmatprep.subr.bf16.mxu0 0
      %1247 = vmatpush1.bf16.msra.mxu0 0
      %1248 = vmatprep.subr.bf16.mxu0 0
      %1249 = vmatpush1.bf16.msra.mxu0 0
      %1250 = vmatprep.subr.bf16.mxu0 0
      %1251 = vmatpush1.bf16.msra.mxu0 0
      %1252 = vmatprep.subr.bf16.mxu0 0
      %1253 = vmatpush1.bf16.msra.mxu0 %v1198
      %1254 = vmatprep.subr.bf16.mxu0 0
      %1255 = vmatpush1.bf16.msra.mxu0 %v1197
      %1256 = vmatprep.subr.bf16.mxu0 0
      %1257 = vmatpush2.bf16.msra.mxu0 0
      %1258 = vmatprep.subr.bf16.mxu0 0
      %1259 = vmatpush2.bf16.msra.mxu0 0
      %1260 = vmatprep.subr.bf16.mxu0 0
      %1261 = vmatpush2.bf16.msra.mxu0 0
      %1262 = vmatprep.subr.bf16.mxu0 0
      %1263 = vmatpush2.bf16.msra.mxu0 0
      %1264 = vmatprep.subr.bf16.mxu0 0
      %1265 = vmatpush2.bf16.msra.mxu0 0
      %1266 = vmatprep.subr.bf16.mxu0 0
      %1267 = vmatpush2.bf16.msra.mxu0 0
      %1268 = vmatprep.subr.bf16.mxu0 0
      %1269 = vmatpush2.bf16.msra.mxu0 0
      %1270 = vmatprep.subr.bf16.mxu0 0
      %1271 = vmatpush2.bf16.msra.mxu0 0
      %1272 = vmatprep.mubr.bf16.mxu0 0
      %1273 = vmatmul.mubr.bf16.gmra.mxu0 %v1235
      %v1274 = vpop.f32.mrf.mxu0
      %v1275 = vadd.f32 %v1206, %v1274
      %v1276 = vpop.f32.mrf.mxu0
      %v1277 = vpop.f32.mrf.mxu0
      %v1278 = vadd.f32 %v1211, %v1277
      %v1279 = vpop.f32.mrf.mxu0
      %1280 = vmatprep.mubr.bf16.mxu0 0
      %1281 = vmatmul.mubr.bf16.gmra.mxu0 %v1238
      %v1282 = vpop.f32.mrf.mxu0
      %v1283 = vadd.f32 %v1216, %v1282
      %v1284 = vpop.f32.mrf.mxu0
      %v1285 = vpop.f32.mrf.mxu0
      %v1286 = vadd.f32 %v1221, %v1285
      %v1287 = vpop.f32.mrf.mxu0
      %1288 = vdwg.mxu0
      %v1289 = vmax.f32 %v1275, 0.0
      %v1290 = vmax.f32 %v1278, 0.0
      %v1291 = vmax.f32 %v1283, 0.0
      %v1292 = vmax.f32 %v1286, 0.0
      %v1293 = vld [vmem:[%s11] sm:$0xf]
      %v1294 = vld [vmem:[%s11 + $0x4] sm:$0xf]
      %v1295 = vld [vmem:[%s11 + $0x8] sm:$0xf]
      %v1296 = vld [vmem:[%s11 + $0xc] sm:$0xf]
      %v1297 = vld [vmem:[%s11 + $0x10] sm:$0xf]
      %v1298 = vld [vmem:[%s11 + $0x14] sm:$0xf]
      %v1299 = vpack.c.bf16 %v1290, %v1289
      %v1300 = vpack.c.bf16 %v1292, %v1291
      %v1301 = vld [vmem:[%s12] sm:$0xff]
      %v1302 = vld [vmem:[%s12 + $0x8] sm:$0xff]
      %v1303 = vld [vmem:[%s12 + $0x10] sm:$0xff]
      %v1304 = vld [vmem:[%s12 + $0x18] sm:$0xff]
      %v1305 = vld [vmem:[%s12 + $0x20] sm:$0xff]
      %v1306 = vld [vmem:[%s12 + $0x28] sm:$0xff]
      %1308 = vset.pattern.permute.xlu0 0
      %1309 = vperm.xlu0 %1308, %v1301
      %v1310 = vpop.permute.xlu0 %1309
      %1313 = vset.pattern.permute.xlu0 0
      %1314 = vperm.xlu0 %1313, %v1302
      %v1315 = vpop.permute.xlu0 %1314
      %1318 = vset.pattern.permute.xlu0 0
      %1319 = vperm.xlu0 %1318, %v1303
      %v1320 = vpop.permute.xlu0 %1319
      %1323 = vset.pattern.permute.xlu0 0
      %1324 = vperm.xlu0 %1323, %v1304
      %v1325 = vpop.permute.xlu0 %1324
      %1328 = vset.pattern.permute.xlu0 0
      %1329 = vperm.xlu0 %1328, %v1305
      %v1330 = vpop.permute.xlu0 %1329
      %1333 = vset.pattern.permute.xlu0 0
      %1334 = vperm.xlu0 %1333, %v1306
      %v1335 = vpop.permute.xlu0 %1334
      %v1343 = vunpack.c.l.b16 %v1293
      %v1344 = vunpack.c.l.b16 %v1294
      %v1345 = vunpack.c.l.b16 %v1295
      %v1346 = vunpack.c.l.b16 %v1296
      %v1347 = vunpack.c.l.b16 %v1297
      %v1348 = vunpack.c.l.b16 %v1298
      %v1349 = vpack.c.b16 %v1344, %v1343
      %v1350 = vpack.c.b16 %v1346, %v1345
      %v1351 = vpack.c.b16 %v1348, %v1347
      %v1353 = vsel %vm1233, %v1349, 0
      %v1356 = vsel %vm1233, %v1350, 0
      %v1359 = vsel %vm1233, %v1351, 0
      %1361 = vmatprep.subr.bf16.mxu0 0
      %1362 = vmatpush1.bf16.msra.mxu0 0
      %1363 = vmatprep.subr.bf16.mxu0 0
      %1364 = vmatpush1.bf16.msra.mxu0 0
      %1365 = vmatprep.subr.bf16.mxu0 0
      %1366 = vmatpush1.bf16.msra.mxu0 0
      %1367 = vmatprep.subr.bf16.mxu0 0
      %1368 = vmatpush1.bf16.msra.mxu0 0
      %1369 = vmatprep.subr.bf16.mxu0 0
      %1370 = vmatpush1.bf16.msra.mxu0 0
      %1371 = vmatprep.subr.bf16.mxu0 0
      %1372 = vmatpush1.bf16.msra.mxu0 0
      %1373 = vmatprep.subr.bf16.mxu0 0
      %1374 = vmatpush1.bf16.msra.mxu0 %v1300
      %1375 = vmatprep.subr.bf16.mxu0 0
      %1376 = vmatpush1.bf16.msra.mxu0 %v1299
      %1377 = vmatprep.subr.bf16.mxu0 0
      %1378 = vmatpush2.bf16.msra.mxu0 0
      %1379 = vmatprep.subr.bf16.mxu0 0
      %1380 = vmatpush2.bf16.msra.mxu0 0
      %1381 = vmatprep.subr.bf16.mxu0 0
      %1382 = vmatpush2.bf16.msra.mxu0 0
      %1383 = vmatprep.subr.bf16.mxu0 0
      %1384 = vmatpush2.bf16.msra.mxu0 0
      %1385 = vmatprep.subr.bf16.mxu0 0
      %1386 = vmatpush2.bf16.msra.mxu0 0
      %1387 = vmatprep.subr.bf16.mxu0 0
      %1388 = vmatpush2.bf16.msra.mxu0 0
      %1389 = vmatprep.subr.bf16.mxu0 0
      %1390 = vmatpush2.bf16.msra.mxu0 0
      %1391 = vmatprep.subr.bf16.mxu0 0
      %1392 = vmatpush2.bf16.msra.mxu0 0
      %1393 = vmatprep.mubr.bf16.mxu0 0
      %1394 = vmatmul.mubr.bf16.gmra.mxu0 %v1353
      %v1395 = vpop.f32.mrf.mxu0
      %v1396 = vadd.f32 %v1310, %v1395
      %v1397 = vpop.f32.mrf.mxu0
      %v1398 = vpop.f32.mrf.mxu0
      %v1399 = vadd.f32 %v1315, %v1398
      %v1400 = vpop.f32.mrf.mxu0
      %1401 = vmatprep.mubr.bf16.mxu0 0
      %1402 = vmatmul.mubr.bf16.gmra.mxu0 %v1356
      %v1403 = vpop.f32.mrf.mxu0
      %v1404 = vadd.f32 %v1320, %v1403
      %v1405 = vpop.f32.mrf.mxu0
      %v1406 = vpop.f32.mrf.mxu0
      %v1407 = vadd.f32 %v1325, %v1406
      %v1408 = vpop.f32.mrf.mxu0
      %1409 = vmatprep.mubr.bf16.mxu0 0
      %1410 = vmatmul.mubr.bf16.gmra.mxu0 %v1359
      %v1411 = vpop.f32.mrf.mxu0
      %v1412 = vadd.f32 %v1330, %v1411
      %v1413 = vpop.f32.mrf.mxu0
      %v1414 = vpop.f32.mrf.mxu0
      %v1415 = vadd.f32 %v1335, %v1414
      %v1416 = vpop.f32.mrf.mxu0
      %1417 = vdwg.mxu0
      %v1418 = vld [vmem:[%s13] sm:$0xf]
      %v1419 = vld [vmem:[%s13 + $0x4] sm:$0xf]
      %v1420 = vpack.c.bf16 %v1399, %v1396
      %v1421 = vpack.c.bf16 %v1407, %v1404
      %v1422 = vpack.c.bf16 %v1415, %v1412
      %v1425 = vunpack.c.l.b16 %v1418
      %v1426 = vunpack.c.l.b16 %v1419
      %v1427 = vpack.c.b16 %v1426, %v1425
      %v1430 = vsel %vm1133, %v1420, 0
      %v1433 = vsel %vm1133, %v1421, 0
      %v1436 = vsel %vm1133, %v1422, 0
      %1438 = vmatprep.subr.bf16.mxu0 0
      %1439 = vmatpush1.bf16.msra.mxu0 0
      %1440 = vmatprep.subr.bf16.mxu0 0
      %1441 = vmatpush1.bf16.msra.mxu0 0
      %1442 = vmatprep.subr.bf16.mxu0 0
      %1443 = vmatpush1.bf16.msra.mxu0 0
      %1444 = vmatprep.subr.bf16.mxu0 0
      %1445 = vmatpush1.bf16.msra.mxu0 0
      %1446 = vmatprep.subr.bf16.mxu0 0
      %1447 = vmatpush1.bf16.msra.mxu0 0
      %1448 = vmatprep.subr.bf16.mxu0 0
      %1449 = vmatpush1.bf16.msra.mxu0 0
      %1450 = vmatprep.subr.bf16.mxu0 0
      %1451 = vmatpush1.bf16.msra.mxu0 0
      %1452 = vmatprep.subr.bf16.mxu0 0
      %1453 = vmatpush1.bf16.msra.mxu0 %v1427
      %1454 = vmatprep.subr.bf16.mxu0 0
      %1455 = vmatpush2.bf16.msra.mxu0 0
      %1456 = vmatprep.subr.bf16.mxu0 0
      %1457 = vmatpush2.bf16.msra.mxu0 0
      %1458 = vmatprep.subr.bf16.mxu0 0
      %1459 = vmatpush2.bf16.msra.mxu0 0
      %1460 = vmatprep.subr.bf16.mxu0 0
      %1461 = vmatpush2.bf16.msra.mxu0 0
      %1462 = vmatprep.subr.bf16.mxu0 0
      %1463 = vmatpush2.bf16.msra.mxu0 0
      %1464 = vmatprep.subr.bf16.mxu0 0
      %1465 = vmatpush2.bf16.msra.mxu0 0
      %1466 = vmatprep.subr.bf16.mxu0 0
      %1467 = vmatpush2.bf16.msra.mxu0 0
      %1468 = vmatprep.subr.bf16.mxu0 0
      %1469 = vmatpush2.bf16.msra.mxu0 0
      %1470 = vmatprep.mubr.bf16.mxu0 0
      %1471 = vmatmul.mubr.bf16.gmra.mxu0 %v1430
      %v1472 = vpop.f32.mrf.mxu0
      %v1473 = vadd.f32 0.0, %v1472
      %v1474 = vpop.f32.mrf.mxu0
      %v1475 = vpop.f32.mrf.mxu0
      %v1476 = vadd.f32 0.0, %v1475
      %v1477 = vpop.f32.mrf.mxu0
      %1478 = vmatprep.mubr.bf16.mxu0 0
      %1479 = vmatmul.mubr.bf16.gmra.mxu0 %v1433
      %v1480 = vpop.f32.mrf.mxu0
      %v1481 = vadd.f32 0.0, %v1480
      %v1482 = vpop.f32.mrf.mxu0
      %v1483 = vpop.f32.mrf.mxu0
      %v1484 = vadd.f32 0.0, %v1483
      %v1485 = vpop.f32.mrf.mxu0
      %1486 = vmatprep.mubr.bf16.mxu0 0
      %1487 = vmatmul.mubr.bf16.gmra.mxu0 %v1436
      %v1488 = vpop.f32.mrf.mxu0
      %v1489 = vadd.f32 0.0, %v1488
      %v1490 = vpop.f32.mrf.mxu0
      %v1491 = vpop.f32.mrf.mxu0
      %v1492 = vadd.f32 0.0, %v1491
      %v1493 = vpop.f32.mrf.mxu0
      %1494 = vdwg.mxu0
      %v1495 = vld [vmem:[%s14] sm:$0xf]
      %v1496 = vld [vmem:[%s14 + $0x4] sm:$0xf]
      %v1497 = vld [vmem:[%s14 + $0x8] sm:$0xf]
      %v1498 = vld [vmem:[%s14 + $0xc] sm:$0xf]
      %v1499 = vpack.c.bf16 %v1492, %v1489
      %v1500 = vld [vmem:[%s15] sm:$0xff]
      %v1501 = vld [vmem:[%s15 + $0x8] sm:$0xff]
      %v1502 = vld [vmem:[%s15 + $0x10] sm:$0xff]
      %v1503 = vld [vmem:[%s15 + $0x18] sm:$0xff]
      %1505 = vset.pattern.permute.xlu0 0
      %1506 = vperm.xlu0 %1505, %v1500
      %v1507 = vpop.permute.xlu0 %1506
      %1510 = vset.pattern.permute.xlu0 0
      %1511 = vperm.xlu0 %1510, %v1501
      %v1512 = vpop.permute.xlu0 %1511
      %1515 = vset.pattern.permute.xlu0 0
      %1516 = vperm.xlu0 %1515, %v1502
      %v1517 = vpop.permute.xlu0 %1516
      %1520 = vset.pattern.permute.xlu0 0
      %1521 = vperm.xlu0 %1520, %v1503
      %v1522 = vpop.permute.xlu0 %1521
      %v1528 = vunpack.c.l.b16 %v1495
      %v1529 = vunpack.c.l.b16 %v1496
      %v1530 = vunpack.c.l.b16 %v1497
      %v1531 = vunpack.c.l.b16 %v1498
      %v1532 = vpack.c.b16 %v1529, %v1528
      %v1533 = vpack.c.b16 %v1531, %v1530
      %v1535 = vsel %vm1233, %v1532, 0
      %v1538 = vsel %vm1233, %v1533, 0
      %1540 = vmatprep.subr.bf16.mxu0 0
      %1541 = vmatpush1.bf16.msra.mxu0 0
      %1542 = vmatprep.subr.bf16.mxu0 0
      %1543 = vmatpush1.bf16.msra.mxu0 0
      %1544 = vmatprep.subr.bf16.mxu0 0
      %1545 = vmatpush1.bf16.msra.mxu0 0
      %1546 = vmatprep.subr.bf16.mxu0 0
      %1547 = vmatpush1.bf16.msra.mxu0 0
      %1548 = vmatprep.subr.bf16.mxu0 0
      %1549 = vmatpush1.bf16.msra.mxu0 0
      %1550 = vmatprep.subr.bf16.mxu0 0
      %1551 = vmatpush1.bf16.msra.mxu0 0
      %1552 = vmatprep.subr.bf16.mxu0 0
      %1553 = vmatpush1.bf16.msra.mxu0 %v1499
      %1554 = vmatprep.subr.bf16.mxu0 0
      %1555 = vmatpush1.bf16.msra.mxu0 %v1024
      %1556 = vmatprep.subr.bf16.mxu0 0
      %1557 = vmatpush2.bf16.msra.mxu0 0
      %1558 = vmatprep.subr.bf16.mxu0 0
      %1559 = vmatpush2.bf16.msra.mxu0 0
      %1560 = vmatprep.subr.bf16.mxu0 0
      %1561 = vmatpush2.bf16.msra.mxu0 0
      %1562 = vmatprep.subr.bf16.mxu0 0
      %1563 = vmatpush2.bf16.msra.mxu0 0
      %1564 = vmatprep.subr.bf16.mxu0 0
      %1565 = vmatpush2.bf16.msra.mxu0 0
      %1566 = vmatprep.subr.bf16.mxu0 0
      %1567 = vmatpush2.bf16.msra.mxu0 0
      %1568 = vmatprep.subr.bf16.mxu0 0
      %1569 = vmatpush2.bf16.msra.mxu0 0
      %1570 = vmatprep.subr.bf16.mxu0 0
      %1571 = vmatpush2.bf16.msra.mxu0 0
      %1572 = vmatprep.mubr.bf16.mxu0 0
      %1573 = vmatmul.mubr.bf16.gmra.mxu0 %v1535
      %v1574 = vpop.f32.mrf.mxu0
      %v1575 = vadd.f32 %v1507, %v1574
      %v1576 = vpop.f32.mrf.mxu0
      %v1577 = vpop.f32.mrf.mxu0
      %v1578 = vadd.f32 %v1512, %v1577
      %v1579 = vpop.f32.mrf.mxu0
      %1580 = vmatprep.mubr.bf16.mxu0 0
      %1581 = vmatmul.mubr.bf16.gmra.mxu0 %v1538
      %v1582 = vpop.f32.mrf.mxu0
      %v1583 = vadd.f32 %v1517, %v1582
      %v1584 = vpop.f32.mrf.mxu0
      %v1585 = vpop.f32.mrf.mxu0
      %v1586 = vadd.f32 %v1522, %v1585
      %v1587 = vpop.f32.mrf.mxu0
      %1588 = vdwg.mxu0
      %v1589 = vmax.f32 %v1575, 0.0
      %v1590 = vmax.f32 %v1578, 0.0
      %v1591 = vmax.f32 %v1583, 0.0
      %v1592 = vmax.f32 %v1586, 0.0
      %v1593 = vld [vmem:[%s16] sm:$0xf]
      %v1594 = vld [vmem:[%s16 + $0x4] sm:$0xf]
      %v1595 = vld [vmem:[%s16 + $0x8] sm:$0xf]
      %v1596 = vld [vmem:[%s16 + $0xc] sm:$0xf]
      %v1597 = vld [vmem:[%s16 + $0x10] sm:$0xf]
      %v1598 = vld [vmem:[%s16 + $0x14] sm:$0xf]
      %v1599 = vpack.c.bf16 %v1590, %v1589
      %v1600 = vpack.c.bf16 %v1592, %v1591
      %v1601 = vld [vmem:[%s17] sm:$0xff]
      %v1602 = vld [vmem:[%s17 + $0x8] sm:$0xff]
      %v1603 = vld [vmem:[%s17 + $0x10] sm:$0xff]
      %v1604 = vld [vmem:[%s17 + $0x18] sm:$0xff]
      %v1605 = vld [vmem:[%s17 + $0x20] sm:$0xff]
      %v1606 = vld [vmem:[%s17 + $0x28] sm:$0xff]
      %1608 = vset.pattern.permute.xlu0 0
      %1609 = vperm.xlu0 %1608, %v1601
      %v1610 = vpop.permute.xlu0 %1609
      %1613 = vset.pattern.permute.xlu0 0
      %1614 = vperm.xlu0 %1613, %v1602
      %v1615 = vpop.permute.xlu0 %1614
      %1618 = vset.pattern.permute.xlu0 0
      %1619 = vperm.xlu0 %1618, %v1603
      %v1620 = vpop.permute.xlu0 %1619
      %1623 = vset.pattern.permute.xlu0 0
      %1624 = vperm.xlu0 %1623, %v1604
      %v1625 = vpop.permute.xlu0 %1624
      %1628 = vset.pattern.permute.xlu0 0
      %1629 = vperm.xlu0 %1628, %v1605
      %v1630 = vpop.permute.xlu0 %1629
      %1633 = vset.pattern.permute.xlu0 0
      %1634 = vperm.xlu0 %1633, %v1606
      %v1635 = vpop.permute.xlu0 %1634
      %v1643 = vunpack.c.l.b16 %v1593
      %v1644 = vunpack.c.l.b16 %v1594
      %v1645 = vunpack.c.l.b16 %v1595
      %v1646 = vunpack.c.l.b16 %v1596
      %v1647 = vunpack.c.l.b16 %v1597
      %v1648 = vunpack.c.l.b16 %v1598
      %v1649 = vpack.c.b16 %v1644, %v1643
      %v1650 = vpack.c.b16 %v1646, %v1645
      %v1651 = vpack.c.b16 %v1648, %v1647
      %v1653 = vsel %vm1233, %v1649, 0
      %v1656 = vsel %vm1233, %v1650, 0
      %v1659 = vsel %vm1233, %v1651, 0
      %1661 = vmatprep.subr.bf16.mxu0 0
      %1662 = vmatpush1.bf16.msra.mxu0 0
      %1663 = vmatprep.subr.bf16.mxu0 0
      %1664 = vmatpush1.bf16.msra.mxu0 0
      %1665 = vmatprep.subr.bf16.mxu0 0
      %1666 = vmatpush1.bf16.msra.mxu0 0
      %1667 = vmatprep.subr.bf16.mxu0 0
      %1668 = vmatpush1.bf16.msra.mxu0 0
      %1669 = vmatprep.subr.bf16.mxu0 0
      %1670 = vmatpush1.bf16.msra.mxu0 0
      %1671 = vmatprep.subr.bf16.mxu0 0
      %1672 = vmatpush1.bf16.msra.mxu0 0
      %1673 = vmatprep.subr.bf16.mxu0 0
      %1674 = vmatpush1.bf16.msra.mxu0 %v1600
      %1675 = vmatprep.subr.bf16.mxu0 0
      %1676 = vmatpush1.bf16.msra.mxu0 %v1599
      %1677 = vmatprep.subr.bf16.mxu0 0
      %1678 = vmatpush2.bf16.msra.mxu0 0
      %1679 = vmatprep.subr.bf16.mxu0 0
      %1680 = vmatpush2.bf16.msra.mxu0 0
      %1681 = vmatprep.subr.bf16.mxu0 0
      %1682 = vmatpush2.bf16.msra.mxu0 0
      %1683 = vmatprep.subr.bf16.mxu0 0
      %1684 = vmatpush2.bf16.msra.mxu0 0
      %1685 = vmatprep.subr.bf16.mxu0 0
      %1686 = vmatpush2.bf16.msra.mxu0 0
      %1687 = vmatprep.subr.bf16.mxu0 0
      %1688 = vmatpush2.bf16.msra.mxu0 0
      %1689 = vmatprep.subr.bf16.mxu0 0
      %1690 = vmatpush2.bf16.msra.mxu0 0
      %1691 = vmatprep.subr.bf16.mxu0 0
      %1692 = vmatpush2.bf16.msra.mxu0 0
      %1693 = vmatprep.mubr.bf16.mxu0 0
      %1694 = vmatmul.mubr.bf16.gmra.mxu0 %v1653
      %v1695 = vpop.f32.mrf.mxu0
      %v1696 = vadd.f32 %v1610, %v1695
      %v1697 = vpop.f32.mrf.mxu0
      %v1698 = vpop.f32.mrf.mxu0
      %v1699 = vadd.f32 %v1615, %v1698
      %v1700 = vpop.f32.mrf.mxu0
      %1701 = vmatprep.mubr.bf16.mxu0 0
      %1702 = vmatmul.mubr.bf16.gmra.mxu0 %v1656
      %v1703 = vpop.f32.mrf.mxu0
      %v1704 = vadd.f32 %v1620, %v1703
      %v1705 = vpop.f32.mrf.mxu0
      %v1706 = vpop.f32.mrf.mxu0
      %v1707 = vadd.f32 %v1625, %v1706
      %v1708 = vpop.f32.mrf.mxu0
      %1709 = vmatprep.mubr.bf16.mxu0 0
      %1710 = vmatmul.mubr.bf16.gmra.mxu0 %v1659
      %v1711 = vpop.f32.mrf.mxu0
      %v1712 = vadd.f32 %v1630, %v1711
      %v1713 = vpop.f32.mrf.mxu0
      %v1714 = vpop.f32.mrf.mxu0
      %v1715 = vadd.f32 %v1635, %v1714
      %v1716 = vpop.f32.mrf.mxu0
      %1717 = vdwg.mxu0
      %v1718 = vadd.f32 %v1473, %v1696
      %v1719 = vadd.f32 %v1476, %v1699
      %v1720 = vadd.f32 %v1481, %v1704
      %v1721 = vadd.f32 %v1484, %v1707
      %v1722 = vld [vmem:[%s18] sm:$0xff]
      %v1723 = vld [vmem:[%s18 + $0x8] sm:$0xff]
      %v1724 = vld [vmem:[%s18 + $0x10] sm:$0xff]
      %v1725 = vld [vmem:[%s18 + $0x18] sm:$0xff]
      %v1726 = vld [vmem:[%s18 + $0x20] sm:$0xff]
      %v1727 = vld [vmem:[%s18 + $0x28] sm:$0xff]
      %v1728 = vld [vmem:[%s18 + $0x30] sm:$0xff]
      %v1729 = vld [vmem:[%s18 + $0x38] sm:$0xff]
      %v1730 = vpack.c.bf16 %v1719, %v1718
      %v1731 = vpack.c.bf16 %v1721, %v1720
      %v1732 = vpack.c.bf16 %v1715, %v1712
      %v1741 = vunpack.c.l.b16 %v1722
      %v1742 = vunpack.c.h.b16 %v1722
      %v1743 = vunpack.c.l.b16 %v1723
      %v1744 = vunpack.c.h.b16 %v1723
      %v1745 = vunpack.c.l.b16 %v1724
      %v1746 = vunpack.c.h.b16 %v1724
      %v1747 = vunpack.c.l.b16 %v1725
      %v1748 = vunpack.c.h.b16 %v1725
      %v1749 = vunpack.c.l.b16 %v1726
      %v1750 = vunpack.c.h.b16 %v1726
      %v1751 = vunpack.c.l.b16 %v1727
      %v1752 = vunpack.c.h.b16 %v1727
      %v1753 = vunpack.c.l.b16 %v1728
      %v1754 = vunpack.c.h.b16 %v1728
      %v1755 = vunpack.c.l.b16 %v1729
      %v1756 = vunpack.c.h.b16 %v1729
      %v1757 = vpack.c.b16 %v1743, %v1741
      %v1758 = vpack.c.b16 %v1744, %v1742
      %v1759 = vpack.c.b16 %v1747, %v1745
      %v1760 = vpack.c.b16 %v1748, %v1746
      %v1761 = vpack.c.b16 %v1751, %v1749
      %v1762 = vpack.c.b16 %v1752, %v1750
      %v1763 = vpack.c.b16 %v1755, %v1753
      %v1764 = vpack.c.b16 %v1756, %v1754
      %v1774 = vsel %vm1049, %v1730, 0
      %v1777 = vsel %vm1049, %v1731, 0
      %v1780 = vsel %vm1049, %v1732, 0
      %1782 = vmatprep.subr.bf16.mxu0 0
      %1783 = vmatpush1.bf16.msra.mxu0 0
      %1784 = vmatprep.subr.bf16.mxu0 0
      %1785 = vmatpush1.bf16.msra.mxu0 0
      %1786 = vmatprep.subr.bf16.mxu0 0
      %1787 = vmatpush1.bf16.msra.mxu0 0
      %1788 = vmatprep.subr.bf16.mxu0 0
      %1789 = vmatpush1.bf16.msra.mxu0 0
      %1790 = vmatprep.subr.bf16.mxu0 %v1764
      %1791 = vmatpush1.bf16.msra.mxu0 %v1763
      %1792 = vmatprep.subr.bf16.mxu0 %v1762
      %1793 = vmatpush1.bf16.msra.mxu0 %v1761
      %1794 = vmatprep.subr.bf16.mxu0 %v1760
      %1795 = vmatpush1.bf16.msra.mxu0 %v1759
      %1796 = vmatprep.subr.bf16.mxu0 %v1758
      %1797 = vmatpush1.bf16.msra.mxu0 %v1757
      %1798 = vmatprep.subr.bf16.mxu0 0
      %1799 = vmatpush2.bf16.msra.mxu0 0
      %1800 = vmatprep.subr.bf16.mxu0 0
      %1801 = vmatpush2.bf16.msra.mxu0 0
      %1802 = vmatprep.subr.bf16.mxu0 0
      %1803 = vmatpush2.bf16.msra.mxu0 0
      %1804 = vmatprep.subr.bf16.mxu0 0
      %1805 = vmatpush2.bf16.msra.mxu0 0
      %1806 = vmatprep.subr.bf16.mxu0 0
      %1807 = vmatpush2.bf16.msra.mxu0 0
      %1808 = vmatprep.subr.bf16.mxu0 0
      %1809 = vmatpush2.bf16.msra.mxu0 0
      %1810 = vmatprep.subr.bf16.mxu0 0
      %1811 = vmatpush2.bf16.msra.mxu0 0
      %1812 = vmatprep.subr.bf16.mxu0 0
      %1813 = vmatpush2.bf16.msra.mxu0 0
      %1814 = vmatprep.mubr.bf16.mxu0 0
      %1815 = vmatmul.mubr.bf16.gmra.mxu0 %v1774
      %v1816 = vpop.f32.mrf.mxu0
      %v1817 = vadd.f32 0.0, %v1816
      %v1818 = vpop.f32.mrf.mxu0
      %v1819 = vadd.f32 0.0, %v1818
      %v1820 = vpop.f32.mrf.mxu0
      %v1821 = vadd.f32 0.0, %v1820
      %v1822 = vpop.f32.mrf.mxu0
      %v1823 = vadd.f32 0.0, %v1822
      %1824 = vmatprep.mubr.bf16.mxu0 0
      %1825 = vmatmul.mubr.bf16.gmra.mxu0 %v1777
      %v1826 = vpop.f32.mrf.mxu0
      %v1827 = vadd.f32 0.0, %v1826
      %v1828 = vpop.f32.mrf.mxu0
      %v1829 = vadd.f32 0.0, %v1828
      %v1830 = vpop.f32.mrf.mxu0
      %v1831 = vadd.f32 0.0, %v1830
      %v1832 = vpop.f32.mrf.mxu0
      %v1833 = vadd.f32 0.0, %v1832
      %1834 = vmatprep.mubr.bf16.mxu0 0
      %1835 = vmatmul.mubr.bf16.gmra.mxu0 %v1780
      %v1836 = vpop.f32.mrf.mxu0
      %v1837 = vadd.f32 0.0, %v1836
      %v1838 = vpop.f32.mrf.mxu0
      %v1839 = vadd.f32 0.0, %v1838
      %v1840 = vpop.f32.mrf.mxu0
      %v1841 = vadd.f32 0.0, %v1840
      %v1842 = vpop.f32.mrf.mxu0
      %v1843 = vadd.f32 0.0, %v1842
      %1844 = vdwg.mxu0
      %v1845 = vld [vmem:[%s19] sm:$0xf]
      %v1846 = vld [vmem:[%s19 + $0x4] sm:$0xf]
      %v1847 = vld [vmem:[%s19 + $0x8] sm:$0xf]
      %v1848 = vld [vmem:[%s19 + $0xc] sm:$0xf]
      %v1849 = vpack.c.bf16 %v1837, %v775
      %v1850 = vpack.c.bf16 %v1839, %v776
      %v1851 = vpack.c.bf16 %v1841, %v1841
      %v1852 = vpack.c.bf16 %v1843, %v1843
      %v1853 = vld [vmem:[%s20] sm:$0xff]
      %v1854 = vld [vmem:[%s20 + $0x8] sm:$0xff]
      %v1855 = vld [vmem:[%s20 + $0x10] sm:$0xff]
      %v1856 = vld [vmem:[%s20 + $0x18] sm:$0xff]
      %1858 = vset.pattern.permute.xlu0 0
      %1859 = vperm.xlu0 %1858, %v1853
      %v1860 = vpop.permute.xlu0 %1859
      %1863 = vset.pattern.permute.xlu0 0
      %1864 = vperm.xlu0 %1863, %v1854
      %v1865 = vpop.permute.xlu0 %1864
      %1868 = vset.pattern.permute.xlu0 0
      %1869 = vperm.xlu0 %1868, %v1855
      %v1870 = vpop.permute.xlu0 %1869
      %1873 = vset.pattern.permute.xlu0 0
      %1874 = vperm.xlu0 %1873, %v1856
      %v1875 = vpop.permute.xlu0 %1874
      %v1881 = vunpack.c.l.b16 %v1845
      %v1882 = vunpack.c.l.b16 %v1846
      %v1883 = vunpack.c.l.b16 %v1847
      %v1884 = vunpack.c.l.b16 %v1848
      %v1885 = vpack.c.b16 %v1882, %v1881
      %v1886 = vpack.c.b16 %v1884, %v1883
      %vm1887 = vcmask 195584
      %v1889 = vsel %vm1887, %v1885, 0
      %v1892 = vsel %vm1887, %v1886, 0
      %v1895 = vsel %vm727, %v1851, 0
      %v1898 = vsel %vm727, %v1852, 0
      %1900 = vmatprep.subr.bf16.mxu0 0
      %1901 = vmatpush1.bf16.msra.mxu0 0
      %1902 = vmatprep.subr.bf16.mxu0 0
      %1903 = vmatpush1.bf16.msra.mxu0 0
      %1904 = vmatprep.subr.bf16.mxu0 0
      %1905 = vmatpush1.bf16.msra.mxu0 0
      %1906 = vmatprep.subr.bf16.mxu0 0
      %1907 = vmatpush1.bf16.msra.mxu0 0
      %1908 = vmatprep.subr.bf16.mxu0 0
      %1909 = vmatpush1.bf16.msra.mxu0 0
      %1910 = vmatprep.subr.bf16.mxu0 0
      %1911 = vmatpush1.bf16.msra.mxu0 0
      %1912 = vmatprep.subr.bf16.mxu0 %v1898
      %1913 = vmatpush1.bf16.msra.mxu0 %v1895
      %1914 = vmatprep.subr.bf16.mxu0 %v1850
      %1915 = vmatpush1.bf16.msra.mxu0 %v1849
      %1916 = vmatprep.subr.bf16.mxu0 0
      %1917 = vmatpush2.bf16.msra.mxu0 0
      %1918 = vmatprep.subr.bf16.mxu0 0
      %1919 = vmatpush2.bf16.msra.mxu0 0
      %1920 = vmatprep.subr.bf16.mxu0 0
      %1921 = vmatpush2.bf16.msra.mxu0 0
      %1922 = vmatprep.subr.bf16.mxu0 0
      %1923 = vmatpush2.bf16.msra.mxu0 0
      %1924 = vmatprep.subr.bf16.mxu0 0
      %1925 = vmatpush2.bf16.msra.mxu0 0
      %1926 = vmatprep.subr.bf16.mxu0 0
      %1927 = vmatpush2.bf16.msra.mxu0 0
      %1928 = vmatprep.subr.bf16.mxu0 0
      %1929 = vmatpush2.bf16.msra.mxu0 0
      %1930 = vmatprep.subr.bf16.mxu0 0
      %1931 = vmatpush2.bf16.msra.mxu0 0
      %1932 = vmatprep.mubr.bf16.mxu0 0
      %1933 = vmatmul.mubr.bf16.gmra.mxu0 %v1889
      %v1934 = vpop.f32.mrf.mxu0
      %v1935 = vadd.f32 %v1860, %v1934
      %v1936 = vpop.f32.mrf.mxu0
      %v1937 = vadd.f32 %v1860, %v1936
      %v1938 = vpop.f32.mrf.mxu0
      %v1939 = vadd.f32 %v1865, %v1938
      %v1940 = vpop.f32.mrf.mxu0
      %v1941 = vadd.f32 %v1865, %v1940
      %1942 = vmatprep.mubr.bf16.mxu0 0
      %1943 = vmatmul.mubr.bf16.gmra.mxu0 %v1892
      %v1944 = vpop.f32.mrf.mxu0
      %v1945 = vadd.f32 %v1870, %v1944
      %v1946 = vpop.f32.mrf.mxu0
      %v1947 = vadd.f32 %v1870, %v1946
      %v1948 = vpop.f32.mrf.mxu0
      %v1949 = vadd.f32 %v1875, %v1948
      %v1950 = vpop.f32.mrf.mxu0
      %v1951 = vadd.f32 %v1875, %v1950
      %1952 = vdwg.mxu0
      %v1953 = vmax.f32 %v1935, 0.0
      %v1954 = vmax.f32 %v1937, 0.0
      %v1955 = vmax.f32 %v1939, 0.0
      %v1956 = vmax.f32 %v1941, 0.0
      %v1957 = vmax.f32 %v1945, 0.0
      %v1958 = vmax.f32 %v1947, 0.0
      %v1959 = vmax.f32 %v1949, 0.0
      %v1960 = vmax.f32 %v1951, 0.0
      %v1961 = vld [vmem:[%s21] sm:$0xf]
      %v1962 = vld [vmem:[%s21 + $0x4] sm:$0xf]
      %v1963 = vld [vmem:[%s21 + $0x8] sm:$0xf]
      %v1964 = vld [vmem:[%s21 + $0xc] sm:$0xf]
      %v1965 = vld [vmem:[%s21 + $0x10] sm:$0xf]
      %v1966 = vld [vmem:[%s21 + $0x14] sm:$0xf]
      %v1967 = vpack.c.bf16 %v1955, %v1953
      %v1968 = vpack.c.bf16 %v1956, %v1954
      %v1969 = vpack.c.bf16 %v1959, %v1957
      %v1970 = vpack.c.bf16 %v1960, %v1958
      %v1971 = vld [vmem:[%s22] sm:$0xff]
      %v1972 = vld [vmem:[%s22 + $0x8] sm:$0xff]
      %v1973 = vld [vmem:[%s22 + $0x10] sm:$0xff]
      %v1974 = vld [vmem:[%s22 + $0x18] sm:$0xff]
      %v1975 = vld [vmem:[%s22 + $0x20] sm:$0xff]
      %v1976 = vld [vmem:[%s22 + $0x28] sm:$0xff]
      %1978 = vset.pattern.permute.xlu0 0
      %1979 = vperm.xlu0 %1978, %v1971
      %v1980 = vpop.permute.xlu0 %1979
      %1983 = vset.pattern.permute.xlu0 0
      %1984 = vperm.xlu0 %1983, %v1972
      %v1985 = vpop.permute.xlu0 %1984
      %1988 = vset.pattern.permute.xlu0 0
      %1989 = vperm.xlu0 %1988, %v1973
      %v1990 = vpop.permute.xlu0 %1989
      %1993 = vset.pattern.permute.xlu0 0
      %1994 = vperm.xlu0 %1993, %v1974
      %v1995 = vpop.permute.xlu0 %1994
      %1998 = vset.pattern.permute.xlu0 0
      %1999 = vperm.xlu0 %1998, %v1975
      %v2000 = vpop.permute.xlu0 %1999
      %2002 = vset.pattern.permute.xlu0 0
      %2003 = vperm.xlu0 %2002, %v1976
      %v2004 = vpop.permute.xlu0 %2003
      %v2011 = vunpack.c.l.b16 %v1961
      %v2012 = vunpack.c.l.b16 %v1962
      %v2013 = vunpack.c.l.b16 %v1963
      %v2014 = vunpack.c.l.b16 %v1964
      %v2015 = vunpack.c.l.b16 %v1965
      %v2016 = vunpack.c.l.b16 %v1966
      %v2017 = vpack.c.b16 %v2012, %v2011
      %v2018 = vpack.c.b16 %v2014, %v2013
      %v2019 = vpack.c.b16 %v2016, %v2015
      %v2021 = vsel %vm1233, %v2017, 0
      %v2024 = vsel %vm1233, %v2018, 0
      %v2027 = vsel %vm1233, %v2019, 0
      %2029 = vmatprep.subr.bf16.mxu0 0
      %2030 = vmatpush1.bf16.msra.mxu0 0
      %2031 = vmatprep.subr.bf16.mxu0 0
      %2032 = vmatpush1.bf16.msra.mxu0 0
      %2033 = vmatprep.subr.bf16.mxu0 0
      %2034 = vmatpush1.bf16.msra.mxu0 0
      %2035 = vmatprep.subr.bf16.mxu0 0
      %2036 = vmatpush1.bf16.msra.mxu0 0
      %2037 = vmatprep.subr.bf16.mxu0 0
      %2038 = vmatpush1.bf16.msra.mxu0 0
      %2039 = vmatprep.subr.bf16.mxu0 0
      %2040 = vmatpush1.bf16.msra.mxu0 0
      %2041 = vmatprep.subr.bf16.mxu0 %v1970
      %2042 = vmatpush1.bf16.msra.mxu0 %v1969
      %2043 = vmatprep.subr.bf16.mxu0 %v1968
      %2044 = vmatpush1.bf16.msra.mxu0 %v1967
      %2045 = vmatprep.subr.bf16.mxu0 0
      %2046 = vmatpush2.bf16.msra.mxu0 0
      %2047 = vmatprep.subr.bf16.mxu0 0
      %2048 = vmatpush2.bf16.msra.mxu0 0
      %2049 = vmatprep.subr.bf16.mxu0 0
      %2050 = vmatpush2.bf16.msra.mxu0 0
      %2051 = vmatprep.subr.bf16.mxu0 0
      %2052 = vmatpush2.bf16.msra.mxu0 0
      %2053 = vmatprep.subr.bf16.mxu0 0
      %2054 = vmatpush2.bf16.msra.mxu0 0
      %2055 = vmatprep.subr.bf16.mxu0 0
      %2056 = vmatpush2.bf16.msra.mxu0 0
      %2057 = vmatprep.subr.bf16.mxu0 0
      %2058 = vmatpush2.bf16.msra.mxu0 0
      %2059 = vmatprep.subr.bf16.mxu0 0
      %2060 = vmatpush2.bf16.msra.mxu0 0
      %2061 = vmatprep.mubr.bf16.mxu0 0
      %2062 = vmatmul.mubr.bf16.gmra.mxu0 %v2021
      %v2063 = vpop.f32.mrf.mxu0
      %v2064 = vadd.f32 %v1980, %v2063
      %v2065 = vpop.f32.mrf.mxu0
      %v2066 = vadd.f32 %v1980, %v2065
      %v2067 = vpop.f32.mrf.mxu0
      %v2068 = vadd.f32 %v1985, %v2067
      %v2069 = vpop.f32.mrf.mxu0
      %v2070 = vadd.f32 %v1985, %v2069
      %2071 = vmatprep.mubr.bf16.mxu0 0
      %2072 = vmatmul.mubr.bf16.gmra.mxu0 %v2024
      %v2073 = vpop.f32.mrf.mxu0
      %v2074 = vadd.f32 %v1990, %v2073
      %v2075 = vpop.f32.mrf.mxu0
      %v2076 = vadd.f32 %v1990, %v2075
      %v2077 = vpop.f32.mrf.mxu0
      %v2078 = vadd.f32 %v1995, %v2077
      %v2079 = vpop.f32.mrf.mxu0
      %v2080 = vadd.f32 %v1995, %v2079
      %2081 = vmatprep.mubr.bf16.mxu0 0
      %2082 = vmatmul.mubr.bf16.gmra.mxu0 %v2027
      %v2083 = vpop.f32.mrf.mxu0
      %v2084 = vpop.f32.mrf.mxu0
      %v2085 = vpop.f32.mrf.mxu0
      %v2086 = vpop.f32.mrf.mxu0
      %2087 = vdwg.mxu0
      %v2088 = vadd.f32 %v1817, %v2064
      %v2089 = vadd.f32 %v1819, %v2066
      %v2090 = vadd.f32 %v1821, %v2068
      %v2091 = vadd.f32 %v1823, %v2070
      %v2092 = vadd.f32 %v1827, %v2074
      %v2093 = vadd.f32 %v1829, %v2076
      %v2094 = vadd.f32 %v1831, %v2078
      %v2095 = vadd.f32 %v1833, %v2080
      %2096 = vst [vmem:[%s710] sm:$0xff] %v2088
      %2097 = vst [vmem:[%s710 + $0x8] sm:$0xff] %v2089
      %2098 = vst [vmem:[%s710 + $0x10] sm:$0xff] %v2090
      %2099 = vst [vmem:[%s710 + $0x18] sm:$0xff] %v2091
      %2100 = vst [vmem:[%s710 + $0x20] sm:$0xff] %v2092
      %2101 = vst [vmem:[%s710 + $0x28] sm:$0xff] %v2093
      %2102 = vst [vmem:[%s710 + $0x30] sm:$0xff] %v2094
      %2103 = vst [vmem:[%s710 + $0x38] sm:$0xff] %v2095
      %p2104 = scmp.lt.s32.totalorder %s34, 1
      %s2105 = scalar_select %p2104, %s34, 1
      %s2106 = smul.addr %s2105, 8
      %s2107 = smul.addr %s2106, 8
      %s2108 = scalar_lea.vmem %s23, %s2107
      // Predicated region
      $region113: #{dedode_descriptor_forward.1} parent=111 // pred_check
        %p2109 = pneg %p540
      $region114: #{dedode_descriptor_forward.1} parent=111 // pred_check_branch
        %2111 = sbr.rel (%p2109) target = $region116
      $region115: #{dedode_descriptor_forward.1} parent=111 // pred_region
        _
      $region116: #{dedode_descriptor_forward.1} parent=111 // pred_fallthru
        _
    $region112: #{dedode_descriptor_forward.1} parent=5 // pred_fallthru
      _
    %p2112 = scmp.le.s32.totalorder 2, %s29
    // Predicated region
    $region117: #{dedode_descriptor_forward.1} parent=5 // pred_check
      %p2113 = pneg %p2112
    $region118: #{dedode_descriptor_forward.1} parent=5 // pred_check_branch
      %2115 = sbr.rel (%p2113) target = $region120
    $region119: #{dedode_descriptor_forward.1} parent=5 // pred_region
      %s2116 = ssub.s32 %s29, 2
      // Predicated region
      $region121: #{dedode_descriptor_forward.1} parent=119 // pred_check
        %p2117 = pneg %p546
      $region122: #{dedode_descriptor_forward.1} parent=119 // pred_check_branch
        %2119 = sbr.rel (%p2117) target = $region124
      $region123: #{dedode_descriptor_forward.1} parent=119 // pred_region
        %p2120 = scmp.lt.s32.totalorder %s35, 1
        %s2121 = scalar_select %p2120, %s35, 1
        %s2122 = smul.addr %s2121, 8
        %s2123 = smul.addr %s2122, 8
        %s2124 = scalar_lea.vmem %s23, %s2123
      $region124: #{dedode_descriptor_forward.1} parent=119 // pred_fallthru
        _
    $region120: #{dedode_descriptor_forward.1} parent=5 // pred_fallthru
      _
  $region6: #{dedode_descriptor_forward.1} parent=0 // loop_footer
    %s33 = sadd.s32 1, %s29
  $region7: #{dedode_descriptor_forward.1} parent=0 // loop_footer_branch
    %28 = sbr.rel target = $region3
  $region8: #{dedode_descriptor_forward.1} parent=0 // loop_exit
    _

</llo_original>
